<compile_context>
chip_gen: v6e
topology: v6e:2x2x1
jax: 0.10.0
libtpu: 0.0.40
codegen_flags: <defaults>
</compile_context>

<pallas_src>
import functools
import math

import jax
import jax.numpy as jnp
import numpy as np
from jax import lax
from jax.experimental import pallas as pl
from jax.experimental.pallas import tpu as pltpu


# ---------------------------------------------------------------------------
# Planning helpers (all plain Python ints, evaluated at trace time)
# ---------------------------------------------------------------------------

def _round_up(x: int, m: int) -> int:
    return ((x + m - 1) // m) * m


def _sublane_rows(itemsize: int) -> int:
    # sub-32-bit dtypes pack 2/4 rows per sublane word -> need 16/32-row blocks
    return max(8, 32 // itemsize)


def _vmem_limit_bytes() -> int:
    """Generation-aware scoped-VMEM limit (conservative fallback = v7x, 64 MiB)."""
    try:
        cap = int(pltpu.get_tpu_info().vmem_capacity_bytes)
    except Exception:  # interpret mode / older API: assume the smallest chip
        cap = 64 * 1024 * 1024
    # leave headroom for Mosaic-internal scratch
    return max(32 * 1024 * 1024, min(96 * 1024 * 1024, (cap * 3) // 4))


def _plan_gather(n: int, d: int, itemsize: int, force_hbm: bool):
    """Pick (rows_per_step, col_block, padded_width, ...) from a VMEM budget."""
    sub = _sublane_rows(itemsize)
    vmem_limit = _vmem_limit_bytes()
    budget = vmem_limit // 2                 # bytes our pipeline buffers may use
    d128 = _round_up(max(d, 1), 128)

    # Small-slab fast path: keep the whole slab resident in VMEM (counted twice
    # because the input pipeline double-buffers) and gather with local DMAs.
    resident_cost = 2 * n * d128 * itemsize
    resident = (not force_hbm) and resident_cost <= min(budget // 2, 8 * 1024 * 1024)

    if resident:
        col_block = d128
        d_total = d128
        avail = budget - resident_cost
    else:
        # Column-tile very wide rows so even a minimal (sub x col) double-buffered
        # output block fits the budget (v7x: only 64 MiB physical VMEM).
        col_block = d128
        if 2 * sub * col_block * itemsize > budget:
            col_block = max(128, ((budget // (2 * sub * itemsize)) // 128) * 128)
        d_total = _round_up(d, col_block)
        avail = budget

    max_rows = max(sub, avail // (2 * col_block * itemsize))
    rows = int(min(256, max_rows))
    rows = max(sub, (rows // sub) * sub)
    # Keep a few grid steps alive (pipeline depth / megacore sharding on v7x).
    while rows > sub and -(-n // rows) < 4:
        rows -= sub
    return rows, col_block, d_total, sub, vmem_limit, resident


# ---------------------------------------------------------------------------
# Kernel
# ---------------------------------------------------------------------------

def _gather_rows_kernel(rows_per_step, col_block,
                        perm_ref,   # SMEM scalar prefetch: (n_pad,) int32
                        slab_ref,   # HBM (pl.ANY) or resident VMEM block (n, d_total)
                        out_ref,    # VMEM output block: (rows_per_step, col_block)
                        sem):       # single shared DMA semaphore, shape (1,)
    row0 = pl.program_id(0) * rows_per_step
    col0 = pl.multiple_of(pl.program_id(1) * col_block, 128)

    def _copy(dst_row, src_row):
        return pltpu.make_async_copy(
            slab_ref.at[pl.ds(src_row, 1), pl.ds(col0, col_block)],
            out_ref.at[pl.ds(dst_row, 1), :],
            sem.at[0])

    def _issue(r):
        # All perm_ref (SMEM) reads happen before any .wait() below.
        _copy(r, perm_ref[row0 + r]).start()

    def _wait(r):
        # Every row copy has identical size, so waiting with a dummy source
        # descriptor consumes exactly one completed copy from the shared sem.
        _copy(r, 0).wait()

    if rows_per_step <= 64:
        for r in range(rows_per_step):
            _issue(r)
        for r in range(rows_per_step):
            _wait(r)
    else:
        # Descriptor issue occupies the single vector-misc slot; a chunked
        # unroll is as fast as a full unroll without the code bloat.
        lax.fori_loop(0, rows_per_step, lambda r, c: (_issue(r), c)[1], 0, unroll=8)
        lax.fori_loop(0, rows_per_step, lambda r, c: (_wait(r), c)[1], 0, unroll=8)


def video_in_turn_gather(perm, slab, *, rows_per_step=None, col_block=None,
                         force_hbm=False):
    """out[i, :] = slab[perm[i], :] for a 2-D slab, via a Pallas row gather."""
    n, d = slab.shape
    itemsize = jnp.dtype(slab.dtype).itemsize
    rows, cblk, d_total, sub, vmem_limit, resident = _plan_gather(
        n, d, itemsize, force_hbm)
    if rows_per_step is not None:
        rows = rows_per_step
    if col_block is not None:
        cblk = col_block
        d_total = _round_up(d, cblk)
    assert rows % sub == 0, "rows_per_step must respect the dtype sublane packing"
    assert cblk % 128 == 0 and d_total % cblk == 0

    if d_total != d:                        # lane padding (only when needed)
        slab = jnp.pad(slab, ((0, 0), (0, d_total - d)))
    n_pad = _round_up(n, rows)
    perm_pad = perm.astype(jnp.int32)
    if n_pad != n:
        # Padded entries gather row 0 and are sliced away below (harmless).
        perm_pad = jnp.pad(perm_pad, (0, n_pad - n))
    # TODO(synk): for very large n (>~256K rows) chunk the permutation into
    # SMEM per grid step instead of scalar-prefetching the whole array.

    if resident:
        # Full-array VMEM block with a constant index map: fetched once,
        # stays resident; the gather becomes local VMEM->VMEM row DMAs.
        slab_spec = pl.BlockSpec((n, d_total), lambda i, j, perm_ref: (0, 0))
    else:
        # Large slab: stays in HBM, rows are DMA'd straight into the output
        # block (no bounce buffer).
        slab_spec = pl.BlockSpec(memory_space=pl.ANY)

    kernel = functools.partial(_gather_rows_kernel, rows, cblk)
    out = pl.pallas_call(
        kernel,
        out_shape=jax.ShapeDtypeStruct((n_pad, d_total), slab.dtype),
        grid_spec=pltpu.PrefetchScalarGridSpec(
            num_scalar_prefetch=1,                    # perm -> SMEM
            grid=(n_pad // rows, d_total // cblk),
            in_specs=[slab_spec],
            out_specs=pl.BlockSpec((rows, cblk), lambda i, j, perm_ref: (i, j)),
            scratch_shapes=[pltpu.SemaphoreType.DMA((1,))]),
        compiler_params=pltpu.CompilerParams(
            dimension_semantics=("parallel", "arbitrary"),
            vmem_limit_bytes=vmem_limit),
    )(perm_pad, slab)
    return out[:n, :d]


# ---------------------------------------------------------------------------
# Module wrapper
# ---------------------------------------------------------------------------

class VideoInTurn:
    """JAX/Pallas port of the PyTorch VideoInTurn transform.

    regroup-by-bit + concat(0s then 1s) + randperm composes into one row
    permutation; the video rows are gathered by the Pallas kernel, everything
    else is cheap int/bit glue left to XLA.
    """

    def __init__(self, num_group: int):
        self._num_group = num_group
        self._num_sa = int(math.log2(num_group))
        self._steps = 0  # host-side state, mirrors the torch module
        # TODO(synk): self._steps makes __call__ non-jittable as-is; pass `it`
        # explicitly if the whole transform must live under jax.jit.

    def compute_perm(self, rng, group, it):
        """Permutation equivalent to (regroup by bit `it`, concat, randperm)."""
        n = group.shape[0]
        k = self._num_sa - 1 - it              # bit index counted from the LSB
        bit = (group >> k) & 1
        # bit==0 groups first (ascending group id), original order preserved
        # inside each group -> stable argsort; then the torch.randperm shuffle.
        order = jnp.argsort(bit * self._num_group + group, stable=True)
        shuffle = jax.random.permutation(rng, n)
        return order[shuffle].astype(jnp.int32)

    def __call__(self, rng, video, audio, text, target, group):
        it = self._steps % self._num_sa
        self._steps += 1

        group = group.astype(jnp.int32)
        perm = self.compute_perm(rng, group, it)

        # group label / group_others: cheap int bit-math, stays in plain XLA.
        k = self._num_sa - 1 - it
        g_p = jnp.take(group, perm, axis=0)
        lab = ((g_p >> k) & 1).astype(jnp.float32)[:, None]
        oth = (((g_p >> (k + 1)) << k) | (g_p & ((1 << k) - 1))
               ).astype(jnp.int32)[:, None]

        # Only the dominant modality goes through the Pallas gather; the tiny
        # per-row tensors are cheaper as plain XLA gathers.
        n = video.shape[0]
        vshape = video.shape
        v = video_in_turn_gather(perm, video.reshape(n, -1)).reshape(vshape)
        a = jnp.take(audio, perm, axis=0)
        t = jnp.take(text, perm, axis=0)
        tg = jnp.take(target, perm, axis=0)
        return v, a, t, tg, lab, oth


# ---------------------------------------------------------------------------
# Self-test
# ---------------------------------------------------------------------------

if __name__ == "__main__":
    key = jax.random.PRNGKey(0)
    k_v, k_a, k_t, k_tg, k_g, k_shuf = jax.random.split(key, 6)

    num_group = 4            # -> num_sa = 2 (binary strings '00'..'11')
    N = 16
    video = jax.random.normal(k_v, (N, 4, 3, 8, 8), dtype=jnp.float32)
    audio = jax.random.normal(k_a, (N, 64), dtype=jnp.float32)
    text = jax.random.normal(k_t, (N, 32), dtype=jnp.float32)
    target = jax.random.normal(k_tg, (N, 8), dtype=jnp.float32)
    group = jax.random.randint(k_g, (N,), 0, num_group, dtype=jnp.int32)

    module = VideoInTurn(num_group)
    out = jax.block_until_ready(module(k_shuf, video, audio, text, target, group))
    v_o, a_o, t_o, tgt_o, lab_o, oth_o = out

    # --- pure-JAX reference for the same step (steps was 0 -> it = 0) --------
    it = 0
    ref_mod = VideoInTurn(num_group)
    perm = ref_mod.compute_perm(k_shuf, group, it)
    g_p = group[perm]
    k_bit = ref_mod._num_sa - 1 - it
    ref_lab = ((g_p >> k_bit) & 1).astype(jnp.float32)[:, None]
    ref_oth = (((g_p >> (k_bit + 1)) << k_bit)
               | (g_p & ((1 << k_bit) - 1)))[:, None]

    np.testing.assert_allclose(np.asarray(v_o), np.asarray(video[perm]))
    np.testing.assert_allclose(np.asarray(a_o), np.asarray(audio[perm]))
    np.testing.assert_allclose(np.asarray(t_o), np.asarray(text[perm]))
    np.testing.assert_allclose(np.asarray(tgt_o), np.asarray(target[perm]))
    np.testing.assert_allclose(np.asarray(lab_o), np.asarray(ref_lab))
    np.testing.assert_allclose(np.asarray(oth_o),
                               np.asarray(ref_oth.astype(jnp.int32)))

    # --- also exercise the large-slab HBM path with column tiling ------------
    slab = video.reshape(N, -1)
    hbm_out = jax.block_until_ready(
        video_in_turn_gather(perm, slab, rows_per_step=8, col_block=256,
                             force_hbm=True))
    np.testing.assert_allclose(np.asarray(hbm_out), np.asarray(slab[perm]))

    print("KERNEL_OK")
</pallas_src>

<mosaic_0001>
module attributes {stable_mosaic.version = 11 : i64} {
  func.func @_gather_rows_kernel(%arg0: i32, %arg1: i32, %arg2: memref<16xi32, #tpu.memory_space<smem>>, %arg3: memref<16x768xf32, #tpu.memory_space<vmem>>, %arg4: memref<8x768xf32, #tpu.memory_space<vmem>>, %arg5: memref<1x!tpu.dma_semaphore, #tpu.memory_space<semaphore_mem>>) attributes {dimension_semantics = [#tpu.dimension_semantics<parallel>, #tpu.dimension_semantics<arbitrary>], iteration_bounds = array<i64: 2, 1>, scalar_prefetch = 1 : i64, scratch_operands = 1 : i64, tpu.core_type = #tpu.core_type<tc>, window_params = [{pipeline_mode = #tpu.pipeline_mode<synchronous>, transform_indices = @transform_0, window_bounds = array<i64: 16, 768>}, {transform_indices = @transform_1, window_bounds = array<i64: 8, 768>}]} {
    %c8_i32 = arith.constant 8 : i32
    %0 = arith.muli %arg0, %c8_i32 : i32
    %c768_i32 = arith.constant 768 : i32
    %1 = arith.muli %arg1, %c768_i32 : i32
    %2 = tpu.assume_multiple %1, 128 : i32
    %c0_i32 = arith.constant 0 : i32
    %3 = arith.addi %0, %c0_i32 : i32
    %4 = arith.index_cast %3 : i32 to index
    %5 = memref.load %arg2[%4] : memref<16xi32, #tpu.memory_space<smem>>
    %c0_i32_0 = arith.constant 0 : i32
    %6 = tpu.memref_slice %arg3[%5, %2] : memref<16x768xf32, #tpu.memory_space<vmem>> -> memref<1x768xf32, #tpu.memory_space<vmem>>
    %c0_i32_1 = arith.constant 0 : i32
    %c0_i32_2 = arith.constant 0 : i32
    %7 = tpu.memref_slice %arg4[%c0_i32_1, %c0_i32_2] : memref<8x768xf32, #tpu.memory_space<vmem>> -> memref<1x768xf32, #tpu.memory_space<vmem>>
    %8 = tpu.memref_slice %arg5[%c0_i32_0] : memref<1x!tpu.dma_semaphore, #tpu.memory_space<semaphore_mem>> -> memref<1x!tpu.dma_semaphore, #tpu.memory_space<semaphore_mem>>
    %9 = tpu.memref_squeeze %8 : memref<1x!tpu.dma_semaphore, #tpu.memory_space<semaphore_mem>> -> memref<!tpu.dma_semaphore, #tpu.memory_space<semaphore_mem>>
    tpu.enqueue_dma source(%6 : memref<1x768xf32, #tpu.memory_space<vmem>>) target(%7 : memref<1x768xf32, #tpu.memory_space<vmem>>) target_semaphore(%9 : memref<!tpu.dma_semaphore, #tpu.memory_space<semaphore_mem>>)
    %c1_i32 = arith.constant 1 : i32
    %10 = arith.addi %0, %c1_i32 : i32
    %11 = arith.index_cast %10 : i32 to index
    %12 = memref.load %arg2[%11] : memref<16xi32, #tpu.memory_space<smem>>
    %c0_i32_3 = arith.constant 0 : i32
    %13 = tpu.memref_slice %arg3[%12, %2] : memref<16x768xf32, #tpu.memory_space<vmem>> -> memref<1x768xf32, #tpu.memory_space<vmem>>
    %c1_i32_4 = arith.constant 1 : i32
    %c0_i32_5 = arith.constant 0 : i32
    %14 = tpu.memref_slice %arg4[%c1_i32_4, %c0_i32_5] : memref<8x768xf32, #tpu.memory_space<vmem>> -> memref<1x768xf32, #tpu.memory_space<vmem>>
    %15 = tpu.memref_slice %arg5[%c0_i32_3] : memref<1x!tpu.dma_semaphore, #tpu.memory_space<semaphore_mem>> -> memref<1x!tpu.dma_semaphore, #tpu.memory_space<semaphore_mem>>
    %16 = tpu.memref_squeeze %15 : memref<1x!tpu.dma_semaphore, #tpu.memory_space<semaphore_mem>> -> memref<!tpu.dma_semaphore, #tpu.memory_space<semaphore_mem>>
    tpu.enqueue_dma source(%13 : memref<1x768xf32, #tpu.memory_space<vmem>>) target(%14 : memref<1x768xf32, #tpu.memory_space<vmem>>) target_semaphore(%16 : memref<!tpu.dma_semaphore, #tpu.memory_space<semaphore_mem>>)
    %c2_i32 = arith.constant 2 : i32
    %17 = arith.addi %0, %c2_i32 : i32
    %18 = arith.index_cast %17 : i32 to index
    %19 = memref.load %arg2[%18] : memref<16xi32, #tpu.memory_space<smem>>
    %c0_i32_6 = arith.constant 0 : i32
    %20 = tpu.memref_slice %arg3[%19, %2] : memref<16x768xf32, #tpu.memory_space<vmem>> -> memref<1x768xf32, #tpu.memory_space<vmem>>
    %c2_i32_7 = arith.constant 2 : i32
    %c0_i32_8 = arith.constant 0 : i32
    %21 = tpu.memref_slice %arg4[%c2_i32_7, %c0_i32_8] : memref<8x768xf32, #tpu.memory_space<vmem>> -> memref<1x768xf32, #tpu.memory_space<vmem>>
    %22 = tpu.memref_slice %arg5[%c0_i32_6] : memref<1x!tpu.dma_semaphore, #tpu.memory_space<semaphore_mem>> -> memref<1x!tpu.dma_semaphore, #tpu.memory_space<semaphore_mem>>
    %23 = tpu.memref_squeeze %22 : memref<1x!tpu.dma_semaphore, #tpu.memory_space<semaphore_mem>> -> memref<!tpu.dma_semaphore, #tpu.memory_space<semaphore_mem>>
    tpu.enqueue_dma source(%20 : memref<1x768xf32, #tpu.memory_space<vmem>>) target(%21 : memref<1x768xf32, #tpu.memory_space<vmem>>) target_semaphore(%23 : memref<!tpu.dma_semaphore, #tpu.memory_space<semaphore_mem>>)
    %c3_i32 = arith.constant 3 : i32
    %24 = arith.addi %0, %c3_i32 : i32
    %25 = arith.index_cast %24 : i32 to index
    %26 = memref.load %arg2[%25] : memref<16xi32, #tpu.memory_space<smem>>
    %c0_i32_9 = arith.constant 0 : i32
    %27 = tpu.memref_slice %arg3[%26, %2] : memref<16x768xf32, #tpu.memory_space<vmem>> -> memref<1x768xf32, #tpu.memory_space<vmem>>
    %c3_i32_10 = arith.constant 3 : i32
    %c0_i32_11 = arith.constant 0 : i32
    %28 = tpu.memref_slice %arg4[%c3_i32_10, %c0_i32_11] : memref<8x768xf32, #tpu.memory_space<vmem>> -> memref<1x768xf32, #tpu.memory_space<vmem>>
    %29 = tpu.memref_slice %arg5[%c0_i32_9] : memref<1x!tpu.dma_semaphore, #tpu.memory_space<semaphore_mem>> -> memref<1x!tpu.dma_semaphore, #tpu.memory_space<semaphore_mem>>
    %30 = tpu.memref_squeeze %29 : memref<1x!tpu.dma_semaphore, #tpu.memory_space<semaphore_mem>> -> memref<!tpu.dma_semaphore, #tpu.memory_space<semaphore_mem>>
    tpu.enqueue_dma source(%27 : memref<1x768xf32, #tpu.memory_space<vmem>>) target(%28 : memref<1x768xf32, #tpu.memory_space<vmem>>) target_semaphore(%30 : memref<!tpu.dma_semaphore, #tpu.memory_space<semaphore_mem>>)
    %c4_i32 = arith.constant 4 : i32
    %31 = arith.addi %0, %c4_i32 : i32
    %32 = arith.index_cast %31 : i32 to index
    %33 = memref.load %arg2[%32] : memref<16xi32, #tpu.memory_space<smem>>
    %c0_i32_12 = arith.constant 0 : i32
    %34 = tpu.memref_slice %arg3[%33, %2] : memref<16x768xf32, #tpu.memory_space<vmem>> -> memref<1x768xf32, #tpu.memory_space<vmem>>
    %c4_i32_13 = arith.constant 4 : i32
    %c0_i32_14 = arith.constant 0 : i32
    %35 = tpu.memref_slice %arg4[%c4_i32_13, %c0_i32_14] : memref<8x768xf32, #tpu.memory_space<vmem>> -> memref<1x768xf32, #tpu.memory_space<vmem>>
    %36 = tpu.memref_slice %arg5[%c0_i32_12] : memref<1x!tpu.dma_semaphore, #tpu.memory_space<semaphore_mem>> -> memref<1x!tpu.dma_semaphore, #tpu.memory_space<semaphore_mem>>
    %37 = tpu.memref_squeeze %36 : memref<1x!tpu.dma_semaphore, #tpu.memory_space<semaphore_mem>> -> memref<!tpu.dma_semaphore, #tpu.memory_space<semaphore_mem>>
    tpu.enqueue_dma source(%34 : memref<1x768xf32, #tpu.memory_space<vmem>>) target(%35 : memref<1x768xf32, #tpu.memory_space<vmem>>) target_semaphore(%37 : memref<!tpu.dma_semaphore, #tpu.memory_space<semaphore_mem>>)
    %c5_i32 = arith.constant 5 : i32
    %38 = arith.addi %0, %c5_i32 : i32
    %39 = arith.index_cast %38 : i32 to index
    %40 = memref.load %arg2[%39] : memref<16xi32, #tpu.memory_space<smem>>
    %c0_i32_15 = arith.constant 0 : i32
    %41 = tpu.memref_slice %arg3[%40, %2] : memref<16x768xf32, #tpu.memory_space<vmem>> -> memref<1x768xf32, #tpu.memory_space<vmem>>
    %c5_i32_16 = arith.constant 5 : i32
    %c0_i32_17 = arith.constant 0 : i32
    %42 = tpu.memref_slice %arg4[%c5_i32_16, %c0_i32_17] : memref<8x768xf32, #tpu.memory_space<vmem>> -> memref<1x768xf32, #tpu.memory_space<vmem>>
    %43 = tpu.memref_slice %arg5[%c0_i32_15] : memref<1x!tpu.dma_semaphore, #tpu.memory_space<semaphore_mem>> -> memref<1x!tpu.dma_semaphore, #tpu.memory_space<semaphore_mem>>
    %44 = tpu.memref_squeeze %43 : memref<1x!tpu.dma_semaphore, #tpu.memory_space<semaphore_mem>> -> memref<!tpu.dma_semaphore, #tpu.memory_space<semaphore_mem>>
    tpu.enqueue_dma source(%41 : memref<1x768xf32, #tpu.memory_space<vmem>>) target(%42 : memref<1x768xf32, #tpu.memory_space<vmem>>) target_semaphore(%44 : memref<!tpu.dma_semaphore, #tpu.memory_space<semaphore_mem>>)
    %c6_i32 = arith.constant 6 : i32
    %45 = arith.addi %0, %c6_i32 : i32
    %46 = arith.index_cast %45 : i32 to index
    %47 = memref.load %arg2[%46] : memref<16xi32, #tpu.memory_space<smem>>
    %c0_i32_18 = arith.constant 0 : i32
    %48 = tpu.memref_slice %arg3[%47, %2] : memref<16x768xf32, #tpu.memory_space<vmem>> -> memref<1x768xf32, #tpu.memory_space<vmem>>
    %c6_i32_19 = arith.constant 6 : i32
    %c0_i32_20 = arith.constant 0 : i32
    %49 = tpu.memref_slice %arg4[%c6_i32_19, %c0_i32_20] : memref<8x768xf32, #tpu.memory_space<vmem>> -> memref<1x768xf32, #tpu.memory_space<vmem>>
    %50 = tpu.memref_slice %arg5[%c0_i32_18] : memref<1x!tpu.dma_semaphore, #tpu.memory_space<semaphore_mem>> -> memref<1x!tpu.dma_semaphore, #tpu.memory_space<semaphore_mem>>
    %51 = tpu.memref_squeeze %50 : memref<1x!tpu.dma_semaphore, #tpu.memory_space<semaphore_mem>> -> memref<!tpu.dma_semaphore, #tpu.memory_space<semaphore_mem>>
    tpu.enqueue_dma source(%48 : memref<1x768xf32, #tpu.memory_space<vmem>>) target(%49 : memref<1x768xf32, #tpu.memory_space<vmem>>) target_semaphore(%51 : memref<!tpu.dma_semaphore, #tpu.memory_space<semaphore_mem>>)
    %c7_i32 = arith.constant 7 : i32
    %52 = arith.addi %0, %c7_i32 : i32
    %53 = arith.index_cast %52 : i32 to index
    %54 = memref.load %arg2[%53] : memref<16xi32, #tpu.memory_space<smem>>
    %c0_i32_21 = arith.constant 0 : i32
    %55 = tpu.memref_slice %arg3[%54, %2] : memref<16x768xf32, #tpu.memory_space<vmem>> -> memref<1x768xf32, #tpu.memory_space<vmem>>
    %c7_i32_22 = arith.constant 7 : i32
    %c0_i32_23 = arith.constant 0 : i32
    %56 = tpu.memref_slice %arg4[%c7_i32_22, %c0_i32_23] : memref<8x768xf32, #tpu.memory_space<vmem>> -> memref<1x768xf32, #tpu.memory_space<vmem>>
    %57 = tpu.memref_slice %arg5[%c0_i32_21] : memref<1x!tpu.dma_semaphore, #tpu.memory_space<semaphore_mem>> -> memref<1x!tpu.dma_semaphore, #tpu.memory_space<semaphore_mem>>
    %58 = tpu.memref_squeeze %57 : memref<1x!tpu.dma_semaphore, #tpu.memory_space<semaphore_mem>> -> memref<!tpu.dma_semaphore, #tpu.memory_space<semaphore_mem>>
    tpu.enqueue_dma source(%55 : memref<1x768xf32, #tpu.memory_space<vmem>>) target(%56 : memref<1x768xf32, #tpu.memory_space<vmem>>) target_semaphore(%58 : memref<!tpu.dma_semaphore, #tpu.memory_space<semaphore_mem>>)
    %c0_i32_24 = arith.constant 0 : i32
    %c0_i32_25 = arith.constant 0 : i32
    %59 = tpu.memref_slice %arg3[%c0_i32_25, %2] : memref<16x768xf32, #tpu.memory_space<vmem>> -> memref<1x768xf32, #tpu.memory_space<vmem>>
    %c0_i32_26 = arith.constant 0 : i32
    %c0_i32_27 = arith.constant 0 : i32
    %60 = tpu.memref_slice %arg4[%c0_i32_26, %c0_i32_27] : memref<8x768xf32, #tpu.memory_space<vmem>> -> memref<1x768xf32, #tpu.memory_space<vmem>>
    %61 = tpu.memref_slice %arg5[%c0_i32_24] : memref<1x!tpu.dma_semaphore, #tpu.memory_space<semaphore_mem>> -> memref<1x!tpu.dma_semaphore, #tpu.memory_space<semaphore_mem>>
    %62 = tpu.memref_squeeze %61 : memref<1x!tpu.dma_semaphore, #tpu.memory_space<semaphore_mem>> -> memref<!tpu.dma_semaphore, #tpu.memory_space<semaphore_mem>>
    tpu.wait_dma2 semaphore(%62 : memref<!tpu.dma_semaphore, #tpu.memory_space<semaphore_mem>>) src(%59 : memref<1x768xf32, #tpu.memory_space<vmem>>) dst(%60 : memref<1x768xf32, #tpu.memory_space<vmem>>)
    %c0_i32_28 = arith.constant 0 : i32
    %c0_i32_29 = arith.constant 0 : i32
    %63 = tpu.memref_slice %arg3[%c0_i32_29, %2] : memref<16x768xf32, #tpu.memory_space<vmem>> -> memref<1x768xf32, #tpu.memory_space<vmem>>
    %c1_i32_30 = arith.constant 1 : i32
    %c0_i32_31 = arith.constant 0 : i32
    %64 = tpu.memref_slice %arg4[%c1_i32_30, %c0_i32_31] : memref<8x768xf32, #tpu.memory_space<vmem>> -> memref<1x768xf32, #tpu.memory_space<vmem>>
    %65 = tpu.memref_slice %arg5[%c0_i32_28] : memref<1x!tpu.dma_semaphore, #tpu.memory_space<semaphore_mem>> -> memref<1x!tpu.dma_semaphore, #tpu.memory_space<semaphore_mem>>
    %66 = tpu.memref_squeeze %65 : memref<1x!tpu.dma_semaphore, #tpu.memory_space<semaphore_mem>> -> memref<!tpu.dma_semaphore, #tpu.memory_space<semaphore_mem>>
    tpu.wait_dma2 semaphore(%66 : memref<!tpu.dma_semaphore, #tpu.memory_space<semaphore_mem>>) src(%63 : memref<1x768xf32, #tpu.memory_space<vmem>>) dst(%64 : memref<1x768xf32, #tpu.memory_space<vmem>>)
    %c0_i32_32 = arith.constant 0 : i32
    %c0_i32_33 = arith.constant 0 : i32
    %67 = tpu.memref_slice %arg3[%c0_i32_33, %2] : memref<16x768xf32, #tpu.memory_space<vmem>> -> memref<1x768xf32, #tpu.memory_space<vmem>>
    %c2_i32_34 = arith.constant 2 : i32
    %c0_i32_35 = arith.constant 0 : i32
    %68 = tpu.memref_slice %arg4[%c2_i32_34, %c0_i32_35] : memref<8x768xf32, #tpu.memory_space<vmem>> -> memref<1x768xf32, #tpu.memory_space<vmem>>
    %69 = tpu.memref_slice %arg5[%c0_i32_32] : memref<1x!tpu.dma_semaphore, #tpu.memory_space<semaphore_mem>> -> memref<1x!tpu.dma_semaphore, #tpu.memory_space<semaphore_mem>>
    %70 = tpu.memref_squeeze %69 : memref<1x!tpu.dma_semaphore, #tpu.memory_space<semaphore_mem>> -> memref<!tpu.dma_semaphore, #tpu.memory_space<semaphore_mem>>
    tpu.wait_dma2 semaphore(%70 : memref<!tpu.dma_semaphore, #tpu.memory_space<semaphore_mem>>) src(%67 : memref<1x768xf32, #tpu.memory_space<vmem>>) dst(%68 : memref<1x768xf32, #tpu.memory_space<vmem>>)
    %c0_i32_36 = arith.constant 0 : i32
    %c0_i32_37 = arith.constant 0 : i32
    %71 = tpu.memref_slice %arg3[%c0_i32_37, %2] : memref<16x768xf32, #tpu.memory_space<vmem>> -> memref<1x768xf32, #tpu.memory_space<vmem>>
    %c3_i32_38 = arith.constant 3 : i32
    %c0_i32_39 = arith.constant 0 : i32
    %72 = tpu.memref_slice %arg4[%c3_i32_38, %c0_i32_39] : memref<8x768xf32, #tpu.memory_space<vmem>> -> memref<1x768xf32, #tpu.memory_space<vmem>>
    %73 = tpu.memref_slice %arg5[%c0_i32_36] : memref<1x!tpu.dma_semaphore, #tpu.memory_space<semaphore_mem>> -> memref<1x!tpu.dma_semaphore, #tpu.memory_space<semaphore_mem>>
    %74 = tpu.memref_squeeze %73 : memref<1x!tpu.dma_semaphore, #tpu.memory_space<semaphore_mem>> -> memref<!tpu.dma_semaphore, #tpu.memory_space<semaphore_mem>>
    tpu.wait_dma2 semaphore(%74 : memref<!tpu.dma_semaphore, #tpu.memory_space<semaphore_mem>>) src(%71 : memref<1x768xf32, #tpu.memory_space<vmem>>) dst(%72 : memref<1x768xf32, #tpu.memory_space<vmem>>)
    %c0_i32_40 = arith.constant 0 : i32
    %c0_i32_41 = arith.constant 0 : i32
    %75 = tpu.memref_slice %arg3[%c0_i32_41, %2] : memref<16x768xf32, #tpu.memory_space<vmem>> -> memref<1x768xf32, #tpu.memory_space<vmem>>
    %c4_i32_42 = arith.constant 4 : i32
    %c0_i32_43 = arith.constant 0 : i32
    %76 = tpu.memref_slice %arg4[%c4_i32_42, %c0_i32_43] : memref<8x768xf32, #tpu.memory_space<vmem>> -> memref<1x768xf32, #tpu.memory_space<vmem>>
    %77 = tpu.memref_slice %arg5[%c0_i32_40] : memref<1x!tpu.dma_semaphore, #tpu.memory_space<semaphore_mem>> -> memref<1x!tpu.dma_semaphore, #tpu.memory_space<semaphore_mem>>
    %78 = tpu.memref_squeeze %77 : memref<1x!tpu.dma_semaphore, #tpu.memory_space<semaphore_mem>> -> memref<!tpu.dma_semaphore, #tpu.memory_space<semaphore_mem>>
    tpu.wait_dma2 semaphore(%78 : memref<!tpu.dma_semaphore, #tpu.memory_space<semaphore_mem>>) src(%75 : memref<1x768xf32, #tpu.memory_space<vmem>>) dst(%76 : memref<1x768xf32, #tpu.memory_space<vmem>>)
    %c0_i32_44 = arith.constant 0 : i32
    %c0_i32_45 = arith.constant 0 : i32
    %79 = tpu.memref_slice %arg3[%c0_i32_45, %2] : memref<16x768xf32, #tpu.memory_space<vmem>> -> memref<1x768xf32, #tpu.memory_space<vmem>>
    %c5_i32_46 = arith.constant 5 : i32
    %c0_i32_47 = arith.constant 0 : i32
    %80 = tpu.memref_slice %arg4[%c5_i32_46, %c0_i32_47] : memref<8x768xf32, #tpu.memory_space<vmem>> -> memref<1x768xf32, #tpu.memory_space<vmem>>
    %81 = tpu.memref_slice %arg5[%c0_i32_44] : memref<1x!tpu.dma_semaphore, #tpu.memory_space<semaphore_mem>> -> memref<1x!tpu.dma_semaphore, #tpu.memory_space<semaphore_mem>>
    %82 = tpu.memref_squeeze %81 : memref<1x!tpu.dma_semaphore, #tpu.memory_space<semaphore_mem>> -> memref<!tpu.dma_semaphore, #tpu.memory_space<semaphore_mem>>
    tpu.wait_dma2 semaphore(%82 : memref<!tpu.dma_semaphore, #tpu.memory_space<semaphore_mem>>) src(%79 : memref<1x768xf32, #tpu.memory_space<vmem>>) dst(%80 : memref<1x768xf32, #tpu.memory_space<vmem>>)
    %c0_i32_48 = arith.constant 0 : i32
    %c0_i32_49 = arith.constant 0 : i32
    %83 = tpu.memref_slice %arg3[%c0_i32_49, %2] : memref<16x768xf32, #tpu.memory_space<vmem>> -> memref<1x768xf32, #tpu.memory_space<vmem>>
    %c6_i32_50 = arith.constant 6 : i32
    %c0_i32_51 = arith.constant 0 : i32
    %84 = tpu.memref_slice %arg4[%c6_i32_50, %c0_i32_51] : memref<8x768xf32, #tpu.memory_space<vmem>> -> memref<1x768xf32, #tpu.memory_space<vmem>>
    %85 = tpu.memref_slice %arg5[%c0_i32_48] : memref<1x!tpu.dma_semaphore, #tpu.memory_space<semaphore_mem>> -> memref<1x!tpu.dma_semaphore, #tpu.memory_space<semaphore_mem>>
    %86 = tpu.memref_squeeze %85 : memref<1x!tpu.dma_semaphore, #tpu.memory_space<semaphore_mem>> -> memref<!tpu.dma_semaphore, #tpu.memory_space<semaphore_mem>>
    tpu.wait_dma2 semaphore(%86 : memref<!tpu.dma_semaphore, #tpu.memory_space<semaphore_mem>>) src(%83 : memref<1x768xf32, #tpu.memory_space<vmem>>) dst(%84 : memref<1x768xf32, #tpu.memory_space<vmem>>)
    %c0_i32_52 = arith.constant 0 : i32
    %c0_i32_53 = arith.constant 0 : i32
    %87 = tpu.memref_slice %arg3[%c0_i32_53, %2] : memref<16x768xf32, #tpu.memory_space<vmem>> -> memref<1x768xf32, #tpu.memory_space<vmem>>
    %c7_i32_54 = arith.constant 7 : i32
    %c0_i32_55 = arith.constant 0 : i32
    %88 = tpu.memref_slice %arg4[%c7_i32_54, %c0_i32_55] : memref<8x768xf32, #tpu.memory_space<vmem>> -> memref<1x768xf32, #tpu.memory_space<vmem>>
    %89 = tpu.memref_slice %arg5[%c0_i32_52] : memref<1x!tpu.dma_semaphore, #tpu.memory_space<semaphore_mem>> -> memref<1x!tpu.dma_semaphore, #tpu.memory_space<semaphore_mem>>
    %90 = tpu.memref_squeeze %89 : memref<1x!tpu.dma_semaphore, #tpu.memory_space<semaphore_mem>> -> memref<!tpu.dma_semaphore, #tpu.memory_space<semaphore_mem>>
    tpu.wait_dma2 semaphore(%90 : memref<!tpu.dma_semaphore, #tpu.memory_space<semaphore_mem>>) src(%87 : memref<1x768xf32, #tpu.memory_space<vmem>>) dst(%88 : memref<1x768xf32, #tpu.memory_space<vmem>>)
    return
  }
  func.func @transform_0(%arg0: i32, %arg1: i32, %arg2: memref<16xi32, #tpu.memory_space<smem>>) -> (i32, i32) {
    %c0_i32 = arith.constant 0 : i32
    %c0_i32_0 = arith.constant 0 : i32
    %c0_i32_1 = arith.constant 0 : i32
    return %c0_i32, %c0_i32_0 : i32, i32
  }
  func.func @transform_1(%arg0: i32, %arg1: i32, %arg2: memref<16xi32, #tpu.memory_space<smem>>) -> (i32, i32) {
    %c0_i32 = arith.constant 0 : i32
    return %arg0, %arg1 : i32, i32
  }
}

</mosaic_0001>

<llo_original>
// kernel: tpu_custom_call.1
$region0: #{tpu_custom_call.1}
  #allocation0 [shape = 'u32[]', space=smem, size = 0x4, offset = 0x4, fixed_abs, tag = 'smem constant byte address 0x4 - core index']
  #allocation1 [shape = 'u32[144,128]{1,0:T(1,128)}', space=vmem, size = 0x12000, scoped, tag = 'internal scratch']
  #allocation2 [shape = 's32[1]{0}', space=sflag, size = 0x4, scoped, tag = 'scratch operand']
  #allocation3 [shape = 's32[1]{0}', space=sflag, size = 0x4, scoped, tag = 'scoped memory for tpu_custom_call.1']
  #allocation4 [shape = 'u8[512]{0}', space=smem, size = 0x200, scoped, tag = 'prefetched SMEM operand 0']
  #allocation9 [shape = 's32[]', space=sflag, size = 0x4, offset = 0, fixed_abs, tag = 'sflag constant byte address 0x0 - dummy sync flag']
  #allocation10 [shape = 's32[]', space=sflag, size = 0x4, offset = 0, fixed_abs, tag = 'sflag constant byte address 0x0 - dummy sync flag']
  #allocation11 [shape = 's32[]', space=sflag, size = 0x4, offset = 0, fixed_abs, tag = 'sflag constant byte address 0x0 - dummy sync flag']
  #allocation12 [shape = 's32[]', space=sflag, size = 0x4, offset = 0, fixed_abs, tag = 'sflag constant byte address 0x0 - dummy sync flag']
  #allocation13 [shape = 's32[]', space=sflag, size = 0x4, offset = 0, fixed_abs, tag = 'sflag constant byte address 0x0 - dummy sync flag']
  #allocation14 [shape = 's32[]', space=sflag, size = 0x4, offset = 0, fixed_abs, tag = 'sflag constant byte address 0x0 - dummy sync flag']
  #allocation15 [shape = 's32[]', space=sflag, size = 0x4, offset = 0, fixed_abs, tag = 'sflag constant byte address 0x0 - dummy sync flag']
  #allocation16 [shape = 's32[]', space=sflag, size = 0x4, offset = 0, fixed_abs, tag = 'sflag constant byte address 0x0 - dummy sync flag']
  %s0 = inlined_call_operand.hbm [shape: s32[16], index: 0, kind: input, shape index: {}]
  %s1 = inlined_call_operand.hbm [shape: f32[16,768], index: 1, kind: input, shape index: {}]
  %s2 = inlined_call_operand.hbm [shape: f32[16,768], index: 2, kind: output, shape index: {}]
  %s3 = sld [smem:[#allocation0]]
  $region281: #{tpu_custom_call.1} parent=0
    _
  %s5 = ssub.s32 1, %s3
  %s6 = scalar_select 0, %s5, %s3
  %8 = dma.hbm_to_smem %s0, 16, [#allocation4], [#allocation3]
  %9 = dma.done [#allocation3], 16
  %10 = sfence
  $region1: #{tpu_custom_call.1} parent=0
    #allocation5 [shape = 'u8[49152]{0}', space=vmem, size = 0xc000, scoped, tag = 'input window, operand 1, single buffered']
    #allocation6 [shape = 's32[2]{0}', space=sflag, size = 0x8, scoped, tag = 'scoped memory for tpu_custom_call.1']
    #allocation7 [shape = 's32[2]{0}', space=sflag, size = 0x8, scoped, tag = 'scoped memory for tpu_custom_call.1']
    #allocation8 [shape = 'u8[49152]{0}', space=vmem, size = 0xc000, scoped, tag = 'output window, operand 0']
    %11 = vsyncpa [#allocation6], 0
    %12 = vsyncpa [#allocation7], 0
    %s13 = scalar_lea.sflag [#allocation7], 1
    %14 = vsyncpa %s13, 0
    loop: start=0, step=1, limit=4
    $region2: #{tpu_custom_call.1} parent=1 // loop_pre_header
      _
    $region3: #{tpu_custom_call.1} parent=1 // loop_header
      %s16 = sphi 0, %s20
      %p17 = scmp.ge.s32.totalorder %s16, 4
      %s23 = sphi 0, %s35
      %s24 = sphi 0, %s31
      %s25 = sphi 0, %s23
      %s26 = sphi 0, %s24
      %s27 = sphi 0, %s25
      %s28 = sphi 0, %s26
      %s36 = sphi 0, %s36
      %s38 = sphi 0, %s36
      %s39 = sphi 0, %s38
      %s53 = sphi 0, %s39
      %s61 = sphi 0, %s63
      %s64 = sphi 0, %s61
      %s65 = sphi 0, %s64
      %s81 = sphi 0, %s65
    $region4: #{tpu_custom_call.1} parent=1 // loop_header_branch
      %19 = sbr.rel (%p17) target = $region8
    $region5: #{tpu_custom_call.1} parent=1 // loop_body
      %s21 = ssub.s32 %s16, 1
      %s22 = ssub.s32 %s16, 2
      %s29 = sadd.s32 1, %s24
      %p30 = scmp.ge.s32.totalorder %s29, 1
      %s31 = scalar_select %p30, 0, %s29
      %s32 = sadd.s32 1, %s23
      %s33 = scalar_select %p30, %s32, %s23
      %p34 = scmp.ge.s32.totalorder %s33, 2
      %s35 = scalar_select %p34, 0, %s33
      %s37 = sadd.s32 %s36, 1
      %p40 = scmp.eq.s32.totalorder %s16, 1
      %p41 = scmp.ne.s32.totalorder %s36, %s38
      %p42 = scmp.eq.s32.totalorder %s16, 0
      %p43 = por %p41, %p42
      %p44 = scmp.ne.s32.totalorder %s36, %s38
      %p45 = scmp.eq.s32.totalorder %s21, 1
      %p46 = por %p44, %p45
      %p47 = scmp.ne.s32.totalorder %s38, %s39
      %p48 = scmp.eq.s32.totalorder %s21, 0
      %p49 = por %p47, %p48
      %p50 = scmp.ne.s32.totalorder %s38, %s39
      %p51 = scmp.eq.s32.totalorder %s22, 1
      %p52 = por %p50, %p51
      %p54 = scmp.ne.s32.totalorder %s39, %s53
      %p55 = scmp.eq.s32.totalorder %s22, 0
      %p56 = por %p54, %p55
      %s57 = ssub.s32 %s23, %s35
      %s58 = ssub.s32 %s24, %s31
      %s59 = sor.u32 %s57, %s58
      %p60 = scmp.eq.s32.totalorder %s59, 0
      %s62 = sadd.s32 %s61, 1
      %s63 = scalar_select %p60, %s61, %s62
      %p66 = pneg %p60
      %p67 = scmp.eq.s32.totalorder %s16, 1
      %p68 = por %p66, %p67
      %p69 = scmp.ne.s32.totalorder %s61, %s64
      %p70 = scmp.eq.s32.totalorder %s16, 0
      %p71 = por %p69, %p70
      %p72 = scmp.ne.s32.totalorder %s61, %s64
      %p73 = scmp.eq.s32.totalorder %s21, 1
      %p74 = por %p72, %p73
      %p75 = scmp.ne.s32.totalorder %s64, %s65
      %p76 = scmp.eq.s32.totalorder %s21, 0
      %p77 = por %p75, %p76
      %p78 = scmp.ne.s32.totalorder %s64, %s65
      %p79 = scmp.eq.s32.totalorder %s22, 1
      %p80 = por %p78, %p79
      %p82 = scmp.ne.s32.totalorder %s65, %s81
      %p83 = scmp.eq.s32.totalorder %s22, 0
      %p84 = por %p82, %p83
      %p85 = scmp.le.s32.totalorder 1, %s16
      %p86 = scmp.lt.s32.totalorder %s16, 3
      %p87 = pnand %p85, %p86
      %p88 = pneg %p87
      // Predicated region
      $region9: #{tpu_custom_call.1} parent=5 // pred_check
        _
      $region10: #{tpu_custom_call.1} parent=5 // pred_check_branch
        %90 = sbr.rel (%p87) target = $region12
      $region11: #{tpu_custom_call.1} parent=5 // pred_region
        %s91 = ssub.s32 %s16, 1
        // Predicated region
        $region13: #{tpu_custom_call.1} parent=11 // pred_check
          %p92 = pneg %p49
        $region14: #{tpu_custom_call.1} parent=11 // pred_check_branch
          %94 = sbr.rel (%p92) target = $region16
        $region15: #{tpu_custom_call.1} parent=11 // pred_region
          %s96 = ssub.s32 1536, 1536
          %97 = vsyncadd [#allocation6], %s96
          %s98 = sshll.u32 [#allocation5], 4
          %s99 = int_to_ptr.vmem [resolvable:$true] %s98
          %104 = dma.hbm_to_vmem [thread:$0]  %s1, 1536, %s99, [#allocation6], 768, 768, 48
        $region16: #{tpu_custom_call.1} parent=11 // pred_fallthru
          _
      $region12: #{tpu_custom_call.1} parent=5 // pred_fallthru
        _
      %p105 = scmp.lt.s32.totalorder %s16, 2
      // Predicated region
      $region17: #{tpu_custom_call.1} parent=5 // pred_check
        %p106 = pneg %p105
      $region18: #{tpu_custom_call.1} parent=5 // pred_check_branch
        %108 = sbr.rel (%p106) target = $region20
      $region19: #{tpu_custom_call.1} parent=5 // pred_region
        _
      $region20: #{tpu_custom_call.1} parent=5 // pred_fallthru
        _
      %p109 = scmp.le.s32.totalorder 1, %s16
      %p110 = scmp.lt.s32.totalorder %s16, 3
      %p111 = pnand %p109, %p110
      %p112 = pneg %p111
      // Predicated region
      $region21: #{tpu_custom_call.1} parent=5 // pred_check
        _
      $region22: #{tpu_custom_call.1} parent=5 // pred_check_branch
        %114 = sbr.rel (%p111) target = $region24
      $region23: #{tpu_custom_call.1} parent=5 // pred_region
        %s115 = ssub.s32 %s16, 1
        // Predicated region
        $region25: #{tpu_custom_call.1} parent=23 // pred_check
          %p116 = pneg %p49
        $region26: #{tpu_custom_call.1} parent=23 // pred_check_branch
          %118 = sbr.rel (%p116) target = $region28
        $region27: #{tpu_custom_call.1} parent=23 // pred_region
          %119 = dma.done [#allocation6], 1536
        $region28: #{tpu_custom_call.1} parent=23 // pred_fallthru
          _
        %p120 = pneg %p49
        %p121 = pneg %p46
        %p122 = pneg %p77
        %p123 = pneg %p74
        %s124 = sand.u32 %s64, 1
        %s125 = scalar_lea.sflag [#allocation7], %s124
        %s126 = sand.u32 %s64, 1
        %s127 = smul.addr %s126, 48
        %s128 = scalar_lea.vmem [#allocation8], %s127
        %s129 = smul.u32 6, %s26
        %s130 = smul.u32 %s25, 8
        %s131 = smul.u32 %s26, 768
        %s132 = sld [smem:[#allocation4 + %s130]]
        %s133 = sshrl.u32 %s132, 3
        %s134 = sand.u32 %s132, 7
        %s135 = smul.u32 %s133, 48
        %s136 = sadd.s32 %s134, %s135
        %s137 = sshra.s32 %s131, 7
        %s138 = sand.u32 %s131, 127
        %s139 = smul.u32 %s137, 8
        %s140 = sadd.s32 %s139, %s136
        %s141 = scalar_lea.vmem [#allocation5], %s140
        %p143 = scmp.lt.u32.totalorder 1, 8
        %p144 = pneg %p143
        // Predicated region
        $region29: #{tpu_custom_call.1} parent=23 // pred_check
          _
        $region30: #{tpu_custom_call.1} parent=23 // pred_check_branch
          %146 = sbr.rel (%p143) target = $region32
        $region31: #{tpu_custom_call.1} parent=23 // pred_region
          %s172 = sand.u32 1, 7
          %p173 = scmp.eq.s32.totalorder %s172, 0
          %p174 = pneg %p173
          // Predicated region
          $region44: #{tpu_custom_call.1} parent=31 // pred_check
            _
          $region45: #{tpu_custom_call.1} parent=31 // pred_check_branch
            %176 = sbr.rel (%p173) target = $region47
          $region46: #{tpu_custom_call.1} parent=31 // pred_region
            %s177 = sand.u32 1, 7
            %s178 = ssub.s32 1, %s177
            %s179 = scalar_lea.vmem %s141, %s178 [#allocation5]
            %s180 = ssub.s32 1, %s177
            %s181 = scalar_lea.vmem %s128, %s180 [#allocation8]
            %s182 = sshll.u32 1, %s177
            %s183 = ssub.s32 %s182, 1
            loop: start=0, step=1, limit=1
            $region48: #{tpu_custom_call.1} parent=46 // loop_pre_header
              _
            $region49: #{tpu_custom_call.1} parent=46 // loop_header
              %s185 = sphi 0, %s189
              %p186 = scmp.ge.s32.totalorder %s185, 1
              %s190 = sphi %s179, %s179
              %s191 = sphi %s181, %s181
            $region50: #{tpu_custom_call.1} parent=46 // loop_header_branch
              %188 = sbr.rel (%p186) target = $region54
            $region51: #{tpu_custom_call.1} parent=46 // loop_body
              %v192 = vld [vmem:[%s190] sm:%s183]
              %193 = vst [vmem:[%s191] sm:%s183] %v192
              %v194 = vld [vmem:[%s190 + $0x8] sm:%s183]
              %195 = vst [vmem:[%s191 + $0x8] sm:%s183] %v194
              %v196 = vld [vmem:[%s190 + $0x10] sm:%s183]
              %197 = vst [vmem:[%s191 + $0x10] sm:%s183] %v196
              %v198 = vld [vmem:[%s190 + $0x18] sm:%s183]
              %199 = vst [vmem:[%s191 + $0x18] sm:%s183] %v198
              %v200 = vld [vmem:[%s190 + $0x20] sm:%s183]
              %201 = vst [vmem:[%s191 + $0x20] sm:%s183] %v200
              %v202 = vld [vmem:[%s190 + $0x28] sm:%s183]
              %203 = vst [vmem:[%s191 + $0x28] sm:%s183] %v202
            $region52: #{tpu_custom_call.1} parent=46 // loop_footer
              %s189 = sadd.s32 1, %s185
            $region53: #{tpu_custom_call.1} parent=46 // loop_footer_branch
              %184 = sbr.rel target = $region49
            $region54: #{tpu_custom_call.1} parent=46 // loop_exit
              _
          $region47: #{tpu_custom_call.1} parent=31 // pred_fallthru
            _
        $region32: #{tpu_custom_call.1} parent=23 // pred_fallthru
          _
        // Predicated region
        $region33: #{tpu_custom_call.1} parent=23 // pred_check
          %p147 = pneg %p143
        $region34: #{tpu_custom_call.1} parent=23 // pred_check_branch
          %149 = sbr.rel (%p147) target = $region36
        $region35: #{tpu_custom_call.1} parent=23 // pred_region
          %s150 = sshll.u32 1, 1
          %s151 = ssub.s32 %s150, 1
          loop: start=0, step=1, limit=1
          $region37: #{tpu_custom_call.1} parent=35 // loop_pre_header
            _
          $region38: #{tpu_custom_call.1} parent=35 // loop_header
            %s153 = sphi 0, %s157
            %p154 = scmp.ge.s32.totalorder %s153, 1
            %s158 = sphi %s141, %s141
            %s159 = sphi %s128, %s128
          $region39: #{tpu_custom_call.1} parent=35 // loop_header_branch
            %156 = sbr.rel (%p154) target = $region43
          $region40: #{tpu_custom_call.1} parent=35 // loop_body
            %v160 = vld [vmem:[%s158] sm:%s151]
            %161 = vst [vmem:[%s159] sm:%s151] %v160
            %v162 = vld [vmem:[%s158 + $0x8] sm:%s151]
            %163 = vst [vmem:[%s159 + $0x8] sm:%s151] %v162
            %v164 = vld [vmem:[%s158 + $0x10] sm:%s151]
            %165 = vst [vmem:[%s159 + $0x10] sm:%s151] %v164
            %v166 = vld [vmem:[%s158 + $0x18] sm:%s151]
            %167 = vst [vmem:[%s159 + $0x18] sm:%s151] %v166
            %v168 = vld [vmem:[%s158 + $0x20] sm:%s151]
            %169 = vst [vmem:[%s159 + $0x20] sm:%s151] %v168
            %v170 = vld [vmem:[%s158 + $0x28] sm:%s151]
            %171 = vst [vmem:[%s159 + $0x28] sm:%s151] %v170
          $region41: #{tpu_custom_call.1} parent=35 // loop_footer
            %s157 = sadd.s32 1, %s153
          $region42: #{tpu_custom_call.1} parent=35 // loop_footer_branch
            %152 = sbr.rel target = $region38
          $region43: #{tpu_custom_call.1} parent=35 // loop_exit
            _
        $region36: #{tpu_custom_call.1} parent=23 // pred_fallthru
          _
        // Predicated region
        $region55: #{tpu_custom_call.1} parent=23 // pred_check
          _
        $region56: #{tpu_custom_call.1} parent=23 // pred_check_branch
          %206 = sbr.rel (0) target = $region58
        $region57: #{tpu_custom_call.1} parent=23 // pred_region
          %207 = vsyncadd [#allocation2], 96
        $region58: #{tpu_custom_call.1} parent=23 // pred_fallthru
          _
        %s208 = sadd.s32 %s130, 1
        %s209 = sld [smem:[#allocation4 + %s208]]
        %s210 = sshrl.u32 %s209, 3
        %s211 = sand.u32 %s209, 7
        %s212 = smul.u32 %s210, 48
        %s213 = sadd.s32 %s211, %s212
        %s214 = sadd.s32 %s139, %s213
        %s215 = scalar_lea.vmem [#allocation5], %s214
        %s216 = scalar_lea.vmem %s128, 1 [#allocation8]
        %p218 = scmp.lt.u32.totalorder 1, 8
        %p219 = pneg %p218
        // Predicated region
        $region59: #{tpu_custom_call.1} parent=23 // pred_check
          _
        $region60: #{tpu_custom_call.1} parent=23 // pred_check_branch
          %221 = sbr.rel (%p218) target = $region62
        $region61: #{tpu_custom_call.1} parent=23 // pred_region
          %s247 = sand.u32 1, 7
          %p248 = scmp.eq.s32.totalorder %s247, 0
          %p249 = pneg %p248
          // Predicated region
          $region74: #{tpu_custom_call.1} parent=61 // pred_check
            _
          $region75: #{tpu_custom_call.1} parent=61 // pred_check_branch
            %251 = sbr.rel (%p248) target = $region77
          $region76: #{tpu_custom_call.1} parent=61 // pred_region
            %s252 = sand.u32 1, 7
            %s253 = ssub.s32 1, %s252
            %s254 = scalar_lea.vmem %s215, %s253 [#allocation5]
            %s255 = ssub.s32 1, %s252
            %s256 = scalar_lea.vmem %s216, %s255 [#allocation8]
            %s257 = sshll.u32 1, %s252
            %s258 = ssub.s32 %s257, 1
            loop: start=0, step=1, limit=1
            $region78: #{tpu_custom_call.1} parent=76 // loop_pre_header
              _
            $region79: #{tpu_custom_call.1} parent=76 // loop_header
              %s260 = sphi 0, %s264
              %p261 = scmp.ge.s32.totalorder %s260, 1
              %s265 = sphi %s254, %s254
              %s266 = sphi %s256, %s256
            $region80: #{tpu_custom_call.1} parent=76 // loop_header_branch
              %263 = sbr.rel (%p261) target = $region84
            $region81: #{tpu_custom_call.1} parent=76 // loop_body
              %v267 = vld [vmem:[%s265] sm:%s258]
              %268 = vst [vmem:[%s266] sm:%s258] %v267
              %v269 = vld [vmem:[%s265 + $0x8] sm:%s258]
              %270 = vst [vmem:[%s266 + $0x8] sm:%s258] %v269
              %v271 = vld [vmem:[%s265 + $0x10] sm:%s258]
              %272 = vst [vmem:[%s266 + $0x10] sm:%s258] %v271
              %v273 = vld [vmem:[%s265 + $0x18] sm:%s258]
              %274 = vst [vmem:[%s266 + $0x18] sm:%s258] %v273
              %v275 = vld [vmem:[%s265 + $0x20] sm:%s258]
              %276 = vst [vmem:[%s266 + $0x20] sm:%s258] %v275
              %v277 = vld [vmem:[%s265 + $0x28] sm:%s258]
              %278 = vst [vmem:[%s266 + $0x28] sm:%s258] %v277
            $region82: #{tpu_custom_call.1} parent=76 // loop_footer
              %s264 = sadd.s32 1, %s260
            $region83: #{tpu_custom_call.1} parent=76 // loop_footer_branch
              %259 = sbr.rel target = $region79
            $region84: #{tpu_custom_call.1} parent=76 // loop_exit
              _
          $region77: #{tpu_custom_call.1} parent=61 // pred_fallthru
            _
        $region62: #{tpu_custom_call.1} parent=23 // pred_fallthru
          _
        // Predicated region
        $region63: #{tpu_custom_call.1} parent=23 // pred_check
          %p222 = pneg %p218
        $region64: #{tpu_custom_call.1} parent=23 // pred_check_branch
          %224 = sbr.rel (%p222) target = $region66
        $region65: #{tpu_custom_call.1} parent=23 // pred_region
          %s225 = sshll.u32 1, 1
          %s226 = ssub.s32 %s225, 1
          loop: start=0, step=1, limit=1
          $region67: #{tpu_custom_call.1} parent=65 // loop_pre_header
            _
          $region68: #{tpu_custom_call.1} parent=65 // loop_header
            %s228 = sphi 0, %s232
            %p229 = scmp.ge.s32.totalorder %s228, 1
            %s233 = sphi %s215, %s215
            %s234 = sphi %s216, %s216
          $region69: #{tpu_custom_call.1} parent=65 // loop_header_branch
            %231 = sbr.rel (%p229) target = $region73
          $region70: #{tpu_custom_call.1} parent=65 // loop_body
            %v235 = vld [vmem:[%s233] sm:%s226]
            %236 = vst [vmem:[%s234] sm:%s226] %v235
            %v237 = vld [vmem:[%s233 + $0x8] sm:%s226]
            %238 = vst [vmem:[%s234 + $0x8] sm:%s226] %v237
            %v239 = vld [vmem:[%s233 + $0x10] sm:%s226]
            %240 = vst [vmem:[%s234 + $0x10] sm:%s226] %v239
            %v241 = vld [vmem:[%s233 + $0x18] sm:%s226]
            %242 = vst [vmem:[%s234 + $0x18] sm:%s226] %v241
            %v243 = vld [vmem:[%s233 + $0x20] sm:%s226]
            %244 = vst [vmem:[%s234 + $0x20] sm:%s226] %v243
            %v245 = vld [vmem:[%s233 + $0x28] sm:%s226]
            %246 = vst [vmem:[%s234 + $0x28] sm:%s226] %v245
          $region71: #{tpu_custom_call.1} parent=65 // loop_footer
            %s232 = sadd.s32 1, %s228
          $region72: #{tpu_custom_call.1} parent=65 // loop_footer_branch
            %227 = sbr.rel target = $region68
          $region73: #{tpu_custom_call.1} parent=65 // loop_exit
            _
        $region66: #{tpu_custom_call.1} parent=23 // pred_fallthru
          _
        // Predicated region
        $region85: #{tpu_custom_call.1} parent=23 // pred_check
          _
        $region86: #{tpu_custom_call.1} parent=23 // pred_check_branch
          %281 = sbr.rel (0) target = $region88
        $region87: #{tpu_custom_call.1} parent=23 // pred_region
          %282 = vsyncadd [#allocation2], 96
        $region88: #{tpu_custom_call.1} parent=23 // pred_fallthru
          _
        %s283 = sadd.s32 %s130, 2
        %s284 = sld [smem:[#allocation4 + %s283]]
        %s285 = sshrl.u32 %s284, 3
        %s286 = sand.u32 %s284, 7
        %s287 = smul.u32 %s285, 48
        %s288 = sadd.s32 %s286, %s287
        %s289 = sadd.s32 %s139, %s288
        %s290 = scalar_lea.vmem [#allocation5], %s289
        %s291 = scalar_lea.vmem %s128, 2 [#allocation8]
        %p293 = scmp.lt.u32.totalorder 1, 8
        %p294 = pneg %p293
        // Predicated region
        $region89: #{tpu_custom_call.1} parent=23 // pred_check
          _
        $region90: #{tpu_custom_call.1} parent=23 // pred_check_branch
          %296 = sbr.rel (%p293) target = $region92
        $region91: #{tpu_custom_call.1} parent=23 // pred_region
          %s322 = sand.u32 1, 7
          %p323 = scmp.eq.s32.totalorder %s322, 0
          %p324 = pneg %p323
          // Predicated region
          $region104: #{tpu_custom_call.1} parent=91 // pred_check
            _
          $region105: #{tpu_custom_call.1} parent=91 // pred_check_branch
            %326 = sbr.rel (%p323) target = $region107
          $region106: #{tpu_custom_call.1} parent=91 // pred_region
            %s327 = sand.u32 1, 7
            %s328 = ssub.s32 1, %s327
            %s329 = scalar_lea.vmem %s290, %s328 [#allocation5]
            %s330 = ssub.s32 1, %s327
            %s331 = scalar_lea.vmem %s291, %s330 [#allocation8]
            %s332 = sshll.u32 1, %s327
            %s333 = ssub.s32 %s332, 1
            loop: start=0, step=1, limit=1
            $region108: #{tpu_custom_call.1} parent=106 // loop_pre_header
              _
            $region109: #{tpu_custom_call.1} parent=106 // loop_header
              %s335 = sphi 0, %s339
              %p336 = scmp.ge.s32.totalorder %s335, 1
              %s340 = sphi %s329, %s329
              %s341 = sphi %s331, %s331
            $region110: #{tpu_custom_call.1} parent=106 // loop_header_branch
              %338 = sbr.rel (%p336) target = $region114
            $region111: #{tpu_custom_call.1} parent=106 // loop_body
              %v342 = vld [vmem:[%s340] sm:%s333]
              %343 = vst [vmem:[%s341] sm:%s333] %v342
              %v344 = vld [vmem:[%s340 + $0x8] sm:%s333]
              %345 = vst [vmem:[%s341 + $0x8] sm:%s333] %v344
              %v346 = vld [vmem:[%s340 + $0x10] sm:%s333]
              %347 = vst [vmem:[%s341 + $0x10] sm:%s333] %v346
              %v348 = vld [vmem:[%s340 + $0x18] sm:%s333]
              %349 = vst [vmem:[%s341 + $0x18] sm:%s333] %v348
              %v350 = vld [vmem:[%s340 + $0x20] sm:%s333]
              %351 = vst [vmem:[%s341 + $0x20] sm:%s333] %v350
              %v352 = vld [vmem:[%s340 + $0x28] sm:%s333]
              %353 = vst [vmem:[%s341 + $0x28] sm:%s333] %v352
            $region112: #{tpu_custom_call.1} parent=106 // loop_footer
              %s339 = sadd.s32 1, %s335
            $region113: #{tpu_custom_call.1} parent=106 // loop_footer_branch
              %334 = sbr.rel target = $region109
            $region114: #{tpu_custom_call.1} parent=106 // loop_exit
              _
          $region107: #{tpu_custom_call.1} parent=91 // pred_fallthru
            _
        $region92: #{tpu_custom_call.1} parent=23 // pred_fallthru
          _
        // Predicated region
        $region93: #{tpu_custom_call.1} parent=23 // pred_check
          %p297 = pneg %p293
        $region94: #{tpu_custom_call.1} parent=23 // pred_check_branch
          %299 = sbr.rel (%p297) target = $region96
        $region95: #{tpu_custom_call.1} parent=23 // pred_region
          %s300 = sshll.u32 1, 1
          %s301 = ssub.s32 %s300, 1
          loop: start=0, step=1, limit=1
          $region97: #{tpu_custom_call.1} parent=95 // loop_pre_header
            _
          $region98: #{tpu_custom_call.1} parent=95 // loop_header
            %s303 = sphi 0, %s307
            %p304 = scmp.ge.s32.totalorder %s303, 1
            %s308 = sphi %s290, %s290
            %s309 = sphi %s291, %s291
          $region99: #{tpu_custom_call.1} parent=95 // loop_header_branch
            %306 = sbr.rel (%p304) target = $region103
          $region100: #{tpu_custom_call.1} parent=95 // loop_body
            %v310 = vld [vmem:[%s308] sm:%s301]
            %311 = vst [vmem:[%s309] sm:%s301] %v310
            %v312 = vld [vmem:[%s308 + $0x8] sm:%s301]
            %313 = vst [vmem:[%s309 + $0x8] sm:%s301] %v312
            %v314 = vld [vmem:[%s308 + $0x10] sm:%s301]
            %315 = vst [vmem:[%s309 + $0x10] sm:%s301] %v314
            %v316 = vld [vmem:[%s308 + $0x18] sm:%s301]
            %317 = vst [vmem:[%s309 + $0x18] sm:%s301] %v316
            %v318 = vld [vmem:[%s308 + $0x20] sm:%s301]
            %319 = vst [vmem:[%s309 + $0x20] sm:%s301] %v318
            %v320 = vld [vmem:[%s308 + $0x28] sm:%s301]
            %321 = vst [vmem:[%s309 + $0x28] sm:%s301] %v320
          $region101: #{tpu_custom_call.1} parent=95 // loop_footer
            %s307 = sadd.s32 1, %s303
          $region102: #{tpu_custom_call.1} parent=95 // loop_footer_branch
            %302 = sbr.rel target = $region98
          $region103: #{tpu_custom_call.1} parent=95 // loop_exit
            _
        $region96: #{tpu_custom_call.1} parent=23 // pred_fallthru
          _
        // Predicated region
        $region115: #{tpu_custom_call.1} parent=23 // pred_check
          _
        $region116: #{tpu_custom_call.1} parent=23 // pred_check_branch
          %356 = sbr.rel (0) target = $region118
        $region117: #{tpu_custom_call.1} parent=23 // pred_region
          %357 = vsyncadd [#allocation2], 96
        $region118: #{tpu_custom_call.1} parent=23 // pred_fallthru
          _
        %s358 = sadd.s32 %s130, 3
        %s359 = sld [smem:[#allocation4 + %s358]]
        %s360 = sshrl.u32 %s359, 3
        %s361 = sand.u32 %s359, 7
        %s362 = smul.u32 %s360, 48
        %s363 = sadd.s32 %s361, %s362
        %s364 = sadd.s32 %s139, %s363
        %s365 = scalar_lea.vmem [#allocation5], %s364
        %s366 = scalar_lea.vmem %s128, 3 [#allocation8]
        %p368 = scmp.lt.u32.totalorder 1, 8
        %p369 = pneg %p368
        // Predicated region
        $region119: #{tpu_custom_call.1} parent=23 // pred_check
          _
        $region120: #{tpu_custom_call.1} parent=23 // pred_check_branch
          %371 = sbr.rel (%p368) target = $region122
        $region121: #{tpu_custom_call.1} parent=23 // pred_region
          %s397 = sand.u32 1, 7
          %p398 = scmp.eq.s32.totalorder %s397, 0
          %p399 = pneg %p398
          // Predicated region
          $region134: #{tpu_custom_call.1} parent=121 // pred_check
            _
          $region135: #{tpu_custom_call.1} parent=121 // pred_check_branch
            %401 = sbr.rel (%p398) target = $region137
          $region136: #{tpu_custom_call.1} parent=121 // pred_region
            %s402 = sand.u32 1, 7
            %s403 = ssub.s32 1, %s402
            %s404 = scalar_lea.vmem %s365, %s403 [#allocation5]
            %s405 = ssub.s32 1, %s402
            %s406 = scalar_lea.vmem %s366, %s405 [#allocation8]
            %s407 = sshll.u32 1, %s402
            %s408 = ssub.s32 %s407, 1
            loop: start=0, step=1, limit=1
            $region138: #{tpu_custom_call.1} parent=136 // loop_pre_header
              _
            $region139: #{tpu_custom_call.1} parent=136 // loop_header
              %s410 = sphi 0, %s414
              %p411 = scmp.ge.s32.totalorder %s410, 1
              %s415 = sphi %s404, %s404
              %s416 = sphi %s406, %s406
            $region140: #{tpu_custom_call.1} parent=136 // loop_header_branch
              %413 = sbr.rel (%p411) target = $region144
            $region141: #{tpu_custom_call.1} parent=136 // loop_body
              %v417 = vld [vmem:[%s415] sm:%s408]
              %418 = vst [vmem:[%s416] sm:%s408] %v417
              %v419 = vld [vmem:[%s415 + $0x8] sm:%s408]
              %420 = vst [vmem:[%s416 + $0x8] sm:%s408] %v419
              %v421 = vld [vmem:[%s415 + $0x10] sm:%s408]
              %422 = vst [vmem:[%s416 + $0x10] sm:%s408] %v421
              %v423 = vld [vmem:[%s415 + $0x18] sm:%s408]
              %424 = vst [vmem:[%s416 + $0x18] sm:%s408] %v423
              %v425 = vld [vmem:[%s415 + $0x20] sm:%s408]
              %426 = vst [vmem:[%s416 + $0x20] sm:%s408] %v425
              %v427 = vld [vmem:[%s415 + $0x28] sm:%s408]
              %428 = vst [vmem:[%s416 + $0x28] sm:%s408] %v427
            $region142: #{tpu_custom_call.1} parent=136 // loop_footer
              %s414 = sadd.s32 1, %s410
            $region143: #{tpu_custom_call.1} parent=136 // loop_footer_branch
              %409 = sbr.rel target = $region139
            $region144: #{tpu_custom_call.1} parent=136 // loop_exit
              _
          $region137: #{tpu_custom_call.1} parent=121 // pred_fallthru
            _
        $region122: #{tpu_custom_call.1} parent=23 // pred_fallthru
          _
        // Predicated region
        $region123: #{tpu_custom_call.1} parent=23 // pred_check
          %p372 = pneg %p368
        $region124: #{tpu_custom_call.1} parent=23 // pred_check_branch
          %374 = sbr.rel (%p372) target = $region126
        $region125: #{tpu_custom_call.1} parent=23 // pred_region
          %s375 = sshll.u32 1, 1
          %s376 = ssub.s32 %s375, 1
          loop: start=0, step=1, limit=1
          $region127: #{tpu_custom_call.1} parent=125 // loop_pre_header
            _
          $region128: #{tpu_custom_call.1} parent=125 // loop_header
            %s378 = sphi 0, %s382
            %p379 = scmp.ge.s32.totalorder %s378, 1
            %s383 = sphi %s365, %s365
            %s384 = sphi %s366, %s366
          $region129: #{tpu_custom_call.1} parent=125 // loop_header_branch
            %381 = sbr.rel (%p379) target = $region133
          $region130: #{tpu_custom_call.1} parent=125 // loop_body
            %v385 = vld [vmem:[%s383] sm:%s376]
            %386 = vst [vmem:[%s384] sm:%s376] %v385
            %v387 = vld [vmem:[%s383 + $0x8] sm:%s376]
            %388 = vst [vmem:[%s384 + $0x8] sm:%s376] %v387
            %v389 = vld [vmem:[%s383 + $0x10] sm:%s376]
            %390 = vst [vmem:[%s384 + $0x10] sm:%s376] %v389
            %v391 = vld [vmem:[%s383 + $0x18] sm:%s376]
            %392 = vst [vmem:[%s384 + $0x18] sm:%s376] %v391
            %v393 = vld [vmem:[%s383 + $0x20] sm:%s376]
            %394 = vst [vmem:[%s384 + $0x20] sm:%s376] %v393
            %v395 = vld [vmem:[%s383 + $0x28] sm:%s376]
            %396 = vst [vmem:[%s384 + $0x28] sm:%s376] %v395
          $region131: #{tpu_custom_call.1} parent=125 // loop_footer
            %s382 = sadd.s32 1, %s378
          $region132: #{tpu_custom_call.1} parent=125 // loop_footer_branch
            %377 = sbr.rel target = $region128
          $region133: #{tpu_custom_call.1} parent=125 // loop_exit
            _
        $region126: #{tpu_custom_call.1} parent=23 // pred_fallthru
          _
        // Predicated region
        $region145: #{tpu_custom_call.1} parent=23 // pred_check
          _
        $region146: #{tpu_custom_call.1} parent=23 // pred_check_branch
          %431 = sbr.rel (0) target = $region148
        $region147: #{tpu_custom_call.1} parent=23 // pred_region
          %432 = vsyncadd [#allocation2], 96
        $region148: #{tpu_custom_call.1} parent=23 // pred_fallthru
          _
        %s433 = sadd.s32 %s130, 4
        %s434 = sld [smem:[#allocation4 + %s433]]
        %s435 = sshrl.u32 %s434, 3
        %s436 = sand.u32 %s434, 7
        %s437 = smul.u32 %s435, 48
        %s438 = sadd.s32 %s436, %s437
        %s439 = sadd.s32 %s139, %s438
        %s440 = scalar_lea.vmem [#allocation5], %s439
        %s441 = scalar_lea.vmem %s128, 4 [#allocation8]
        %p443 = scmp.lt.u32.totalorder 1, 8
        %p444 = pneg %p443
        // Predicated region
        $region149: #{tpu_custom_call.1} parent=23 // pred_check
          _
        $region150: #{tpu_custom_call.1} parent=23 // pred_check_branch
          %446 = sbr.rel (%p443) target = $region152
        $region151: #{tpu_custom_call.1} parent=23 // pred_region
          %s472 = sand.u32 1, 7
          %p473 = scmp.eq.s32.totalorder %s472, 0
          %p474 = pneg %p473
          // Predicated region
          $region164: #{tpu_custom_call.1} parent=151 // pred_check
            _
          $region165: #{tpu_custom_call.1} parent=151 // pred_check_branch
            %476 = sbr.rel (%p473) target = $region167
          $region166: #{tpu_custom_call.1} parent=151 // pred_region
            %s477 = sand.u32 1, 7
            %s478 = ssub.s32 1, %s477
            %s479 = scalar_lea.vmem %s440, %s478 [#allocation5]
            %s480 = ssub.s32 1, %s477
            %s481 = scalar_lea.vmem %s441, %s480 [#allocation8]
            %s482 = sshll.u32 1, %s477
            %s483 = ssub.s32 %s482, 1
            loop: start=0, step=1, limit=1
            $region168: #{tpu_custom_call.1} parent=166 // loop_pre_header
              _
            $region169: #{tpu_custom_call.1} parent=166 // loop_header
              %s485 = sphi 0, %s489
              %p486 = scmp.ge.s32.totalorder %s485, 1
              %s490 = sphi %s479, %s479
              %s491 = sphi %s481, %s481
            $region170: #{tpu_custom_call.1} parent=166 // loop_header_branch
              %488 = sbr.rel (%p486) target = $region174
            $region171: #{tpu_custom_call.1} parent=166 // loop_body
              %v492 = vld [vmem:[%s490] sm:%s483]
              %493 = vst [vmem:[%s491] sm:%s483] %v492
              %v494 = vld [vmem:[%s490 + $0x8] sm:%s483]
              %495 = vst [vmem:[%s491 + $0x8] sm:%s483] %v494
              %v496 = vld [vmem:[%s490 + $0x10] sm:%s483]
              %497 = vst [vmem:[%s491 + $0x10] sm:%s483] %v496
              %v498 = vld [vmem:[%s490 + $0x18] sm:%s483]
              %499 = vst [vmem:[%s491 + $0x18] sm:%s483] %v498
              %v500 = vld [vmem:[%s490 + $0x20] sm:%s483]
              %501 = vst [vmem:[%s491 + $0x20] sm:%s483] %v500
              %v502 = vld [vmem:[%s490 + $0x28] sm:%s483]
              %503 = vst [vmem:[%s491 + $0x28] sm:%s483] %v502
            $region172: #{tpu_custom_call.1} parent=166 // loop_footer
              %s489 = sadd.s32 1, %s485
            $region173: #{tpu_custom_call.1} parent=166 // loop_footer_branch
              %484 = sbr.rel target = $region169
            $region174: #{tpu_custom_call.1} parent=166 // loop_exit
              _
          $region167: #{tpu_custom_call.1} parent=151 // pred_fallthru
            _
        $region152: #{tpu_custom_call.1} parent=23 // pred_fallthru
          _
        // Predicated region
        $region153: #{tpu_custom_call.1} parent=23 // pred_check
          %p447 = pneg %p443
        $region154: #{tpu_custom_call.1} parent=23 // pred_check_branch
          %449 = sbr.rel (%p447) target = $region156
        $region155: #{tpu_custom_call.1} parent=23 // pred_region
          %s450 = sshll.u32 1, 1
          %s451 = ssub.s32 %s450, 1
          loop: start=0, step=1, limit=1
          $region157: #{tpu_custom_call.1} parent=155 // loop_pre_header
            _
          $region158: #{tpu_custom_call.1} parent=155 // loop_header
            %s453 = sphi 0, %s457
            %p454 = scmp.ge.s32.totalorder %s453, 1
            %s458 = sphi %s440, %s440
            %s459 = sphi %s441, %s441
          $region159: #{tpu_custom_call.1} parent=155 // loop_header_branch
            %456 = sbr.rel (%p454) target = $region163
          $region160: #{tpu_custom_call.1} parent=155 // loop_body
            %v460 = vld [vmem:[%s458] sm:%s451]
            %461 = vst [vmem:[%s459] sm:%s451] %v460
            %v462 = vld [vmem:[%s458 + $0x8] sm:%s451]
            %463 = vst [vmem:[%s459 + $0x8] sm:%s451] %v462
            %v464 = vld [vmem:[%s458 + $0x10] sm:%s451]
            %465 = vst [vmem:[%s459 + $0x10] sm:%s451] %v464
            %v466 = vld [vmem:[%s458 + $0x18] sm:%s451]
            %467 = vst [vmem:[%s459 + $0x18] sm:%s451] %v466
            %v468 = vld [vmem:[%s458 + $0x20] sm:%s451]
            %469 = vst [vmem:[%s459 + $0x20] sm:%s451] %v468
            %v470 = vld [vmem:[%s458 + $0x28] sm:%s451]
            %471 = vst [vmem:[%s459 + $0x28] sm:%s451] %v470
          $region161: #{tpu_custom_call.1} parent=155 // loop_footer
            %s457 = sadd.s32 1, %s453
          $region162: #{tpu_custom_call.1} parent=155 // loop_footer_branch
            %452 = sbr.rel target = $region158
          $region163: #{tpu_custom_call.1} parent=155 // loop_exit
            _
        $region156: #{tpu_custom_call.1} parent=23 // pred_fallthru
          _
        // Predicated region
        $region175: #{tpu_custom_call.1} parent=23 // pred_check
          _
        $region176: #{tpu_custom_call.1} parent=23 // pred_check_branch
          %506 = sbr.rel (0) target = $region178
        $region177: #{tpu_custom_call.1} parent=23 // pred_region
          %507 = vsyncadd [#allocation2], 96
        $region178: #{tpu_custom_call.1} parent=23 // pred_fallthru
          _
        %s508 = sadd.s32 %s130, 5
        %s509 = sld [smem:[#allocation4 + %s508]]
        %s510 = sshrl.u32 %s509, 3
        %s511 = sand.u32 %s509, 7
        %s512 = smul.u32 %s510, 48
        %s513 = sadd.s32 %s511, %s512
        %s514 = sadd.s32 %s139, %s513
        %s515 = scalar_lea.vmem [#allocation5], %s514
        %s516 = scalar_lea.vmem %s128, 5 [#allocation8]
        %p518 = scmp.lt.u32.totalorder 1, 8
        %p519 = pneg %p518
        // Predicated region
        $region179: #{tpu_custom_call.1} parent=23 // pred_check
          _
        $region180: #{tpu_custom_call.1} parent=23 // pred_check_branch
          %521 = sbr.rel (%p518) target = $region182
        $region181: #{tpu_custom_call.1} parent=23 // pred_region
          %s547 = sand.u32 1, 7
          %p548 = scmp.eq.s32.totalorder %s547, 0
          %p549 = pneg %p548
          // Predicated region
          $region194: #{tpu_custom_call.1} parent=181 // pred_check
            _
          $region195: #{tpu_custom_call.1} parent=181 // pred_check_branch
            %551 = sbr.rel (%p548) target = $region197
          $region196: #{tpu_custom_call.1} parent=181 // pred_region
            %s552 = sand.u32 1, 7
            %s553 = ssub.s32 1, %s552
            %s554 = scalar_lea.vmem %s515, %s553 [#allocation5]
            %s555 = ssub.s32 1, %s552
            %s556 = scalar_lea.vmem %s516, %s555 [#allocation8]
            %s557 = sshll.u32 1, %s552
            %s558 = ssub.s32 %s557, 1
            loop: start=0, step=1, limit=1
            $region198: #{tpu_custom_call.1} parent=196 // loop_pre_header
              _
            $region199: #{tpu_custom_call.1} parent=196 // loop_header
              %s560 = sphi 0, %s564
              %p561 = scmp.ge.s32.totalorder %s560, 1
              %s565 = sphi %s554, %s554
              %s566 = sphi %s556, %s556
            $region200: #{tpu_custom_call.1} parent=196 // loop_header_branch
              %563 = sbr.rel (%p561) target = $region204
            $region201: #{tpu_custom_call.1} parent=196 // loop_body
              %v567 = vld [vmem:[%s565] sm:%s558]
              %568 = vst [vmem:[%s566] sm:%s558] %v567
              %v569 = vld [vmem:[%s565 + $0x8] sm:%s558]
              %570 = vst [vmem:[%s566 + $0x8] sm:%s558] %v569
              %v571 = vld [vmem:[%s565 + $0x10] sm:%s558]
              %572 = vst [vmem:[%s566 + $0x10] sm:%s558] %v571
              %v573 = vld [vmem:[%s565 + $0x18] sm:%s558]
              %574 = vst [vmem:[%s566 + $0x18] sm:%s558] %v573
              %v575 = vld [vmem:[%s565 + $0x20] sm:%s558]
              %576 = vst [vmem:[%s566 + $0x20] sm:%s558] %v575
              %v577 = vld [vmem:[%s565 + $0x28] sm:%s558]
              %578 = vst [vmem:[%s566 + $0x28] sm:%s558] %v577
            $region202: #{tpu_custom_call.1} parent=196 // loop_footer
              %s564 = sadd.s32 1, %s560
            $region203: #{tpu_custom_call.1} parent=196 // loop_footer_branch
              %559 = sbr.rel target = $region199
            $region204: #{tpu_custom_call.1} parent=196 // loop_exit
              _
          $region197: #{tpu_custom_call.1} parent=181 // pred_fallthru
            _
        $region182: #{tpu_custom_call.1} parent=23 // pred_fallthru
          _
        // Predicated region
        $region183: #{tpu_custom_call.1} parent=23 // pred_check
          %p522 = pneg %p518
        $region184: #{tpu_custom_call.1} parent=23 // pred_check_branch
          %524 = sbr.rel (%p522) target = $region186
        $region185: #{tpu_custom_call.1} parent=23 // pred_region
          %s525 = sshll.u32 1, 1
          %s526 = ssub.s32 %s525, 1
          loop: start=0, step=1, limit=1
          $region187: #{tpu_custom_call.1} parent=185 // loop_pre_header
            _
          $region188: #{tpu_custom_call.1} parent=185 // loop_header
            %s528 = sphi 0, %s532
            %p529 = scmp.ge.s32.totalorder %s528, 1
            %s533 = sphi %s515, %s515
            %s534 = sphi %s516, %s516
          $region189: #{tpu_custom_call.1} parent=185 // loop_header_branch
            %531 = sbr.rel (%p529) target = $region193
          $region190: #{tpu_custom_call.1} parent=185 // loop_body
            %v535 = vld [vmem:[%s533] sm:%s526]
            %536 = vst [vmem:[%s534] sm:%s526] %v535
            %v537 = vld [vmem:[%s533 + $0x8] sm:%s526]
            %538 = vst [vmem:[%s534 + $0x8] sm:%s526] %v537
            %v539 = vld [vmem:[%s533 + $0x10] sm:%s526]
            %540 = vst [vmem:[%s534 + $0x10] sm:%s526] %v539
            %v541 = vld [vmem:[%s533 + $0x18] sm:%s526]
            %542 = vst [vmem:[%s534 + $0x18] sm:%s526] %v541
            %v543 = vld [vmem:[%s533 + $0x20] sm:%s526]
            %544 = vst [vmem:[%s534 + $0x20] sm:%s526] %v543
            %v545 = vld [vmem:[%s533 + $0x28] sm:%s526]
            %546 = vst [vmem:[%s534 + $0x28] sm:%s526] %v545
          $region191: #{tpu_custom_call.1} parent=185 // loop_footer
            %s532 = sadd.s32 1, %s528
          $region192: #{tpu_custom_call.1} parent=185 // loop_footer_branch
            %527 = sbr.rel target = $region188
          $region193: #{tpu_custom_call.1} parent=185 // loop_exit
            _
        $region186: #{tpu_custom_call.1} parent=23 // pred_fallthru
          _
        // Predicated region
        $region205: #{tpu_custom_call.1} parent=23 // pred_check
          _
        $region206: #{tpu_custom_call.1} parent=23 // pred_check_branch
          %581 = sbr.rel (0) target = $region208
        $region207: #{tpu_custom_call.1} parent=23 // pred_region
          %582 = vsyncadd [#allocation2], 96
        $region208: #{tpu_custom_call.1} parent=23 // pred_fallthru
          _
        %s583 = sadd.s32 %s130, 6
        %s584 = sld [smem:[#allocation4 + %s583]]
        %s585 = sshrl.u32 %s584, 3
        %s586 = sand.u32 %s584, 7
        %s587 = smul.u32 %s585, 48
        %s588 = sadd.s32 %s586, %s587
        %s589 = sadd.s32 %s139, %s588
        %s590 = scalar_lea.vmem [#allocation5], %s589
        %s591 = scalar_lea.vmem %s128, 6 [#allocation8]
        %p593 = scmp.lt.u32.totalorder 1, 8
        %p594 = pneg %p593
        // Predicated region
        $region209: #{tpu_custom_call.1} parent=23 // pred_check
          _
        $region210: #{tpu_custom_call.1} parent=23 // pred_check_branch
          %596 = sbr.rel (%p593) target = $region212
        $region211: #{tpu_custom_call.1} parent=23 // pred_region
          %s622 = sand.u32 1, 7
          %p623 = scmp.eq.s32.totalorder %s622, 0
          %p624 = pneg %p623
          // Predicated region
          $region224: #{tpu_custom_call.1} parent=211 // pred_check
            _
          $region225: #{tpu_custom_call.1} parent=211 // pred_check_branch
            %626 = sbr.rel (%p623) target = $region227
          $region226: #{tpu_custom_call.1} parent=211 // pred_region
            %s627 = sand.u32 1, 7
            %s628 = ssub.s32 1, %s627
            %s629 = scalar_lea.vmem %s590, %s628 [#allocation5]
            %s630 = ssub.s32 1, %s627
            %s631 = scalar_lea.vmem %s591, %s630 [#allocation8]
            %s632 = sshll.u32 1, %s627
            %s633 = ssub.s32 %s632, 1
            loop: start=0, step=1, limit=1
            $region228: #{tpu_custom_call.1} parent=226 // loop_pre_header
              _
            $region229: #{tpu_custom_call.1} parent=226 // loop_header
              %s635 = sphi 0, %s639
              %p636 = scmp.ge.s32.totalorder %s635, 1
              %s640 = sphi %s629, %s629
              %s641 = sphi %s631, %s631
            $region230: #{tpu_custom_call.1} parent=226 // loop_header_branch
              %638 = sbr.rel (%p636) target = $region234
            $region231: #{tpu_custom_call.1} parent=226 // loop_body
              %v642 = vld [vmem:[%s640] sm:%s633]
              %643 = vst [vmem:[%s641] sm:%s633] %v642
              %v644 = vld [vmem:[%s640 + $0x8] sm:%s633]
              %645 = vst [vmem:[%s641 + $0x8] sm:%s633] %v644
              %v646 = vld [vmem:[%s640 + $0x10] sm:%s633]
              %647 = vst [vmem:[%s641 + $0x10] sm:%s633] %v646
              %v648 = vld [vmem:[%s640 + $0x18] sm:%s633]
              %649 = vst [vmem:[%s641 + $0x18] sm:%s633] %v648
              %v650 = vld [vmem:[%s640 + $0x20] sm:%s633]
              %651 = vst [vmem:[%s641 + $0x20] sm:%s633] %v650
              %v652 = vld [vmem:[%s640 + $0x28] sm:%s633]
              %653 = vst [vmem:[%s641 + $0x28] sm:%s633] %v652
            $region232: #{tpu_custom_call.1} parent=226 // loop_footer
              %s639 = sadd.s32 1, %s635
            $region233: #{tpu_custom_call.1} parent=226 // loop_footer_branch
              %634 = sbr.rel target = $region229
            $region234: #{tpu_custom_call.1} parent=226 // loop_exit
              _
          $region227: #{tpu_custom_call.1} parent=211 // pred_fallthru
            _
        $region212: #{tpu_custom_call.1} parent=23 // pred_fallthru
          _
        // Predicated region
        $region213: #{tpu_custom_call.1} parent=23 // pred_check
          %p597 = pneg %p593
        $region214: #{tpu_custom_call.1} parent=23 // pred_check_branch
          %599 = sbr.rel (%p597) target = $region216
        $region215: #{tpu_custom_call.1} parent=23 // pred_region
          %s600 = sshll.u32 1, 1
          %s601 = ssub.s32 %s600, 1
          loop: start=0, step=1, limit=1
          $region217: #{tpu_custom_call.1} parent=215 // loop_pre_header
            _
          $region218: #{tpu_custom_call.1} parent=215 // loop_header
            %s603 = sphi 0, %s607
            %p604 = scmp.ge.s32.totalorder %s603, 1
            %s608 = sphi %s590, %s590
            %s609 = sphi %s591, %s591
          $region219: #{tpu_custom_call.1} parent=215 // loop_header_branch
            %606 = sbr.rel (%p604) target = $region223
          $region220: #{tpu_custom_call.1} parent=215 // loop_body
            %v610 = vld [vmem:[%s608] sm:%s601]
            %611 = vst [vmem:[%s609] sm:%s601] %v610
            %v612 = vld [vmem:[%s608 + $0x8] sm:%s601]
            %613 = vst [vmem:[%s609 + $0x8] sm:%s601] %v612
            %v614 = vld [vmem:[%s608 + $0x10] sm:%s601]
            %615 = vst [vmem:[%s609 + $0x10] sm:%s601] %v614
            %v616 = vld [vmem:[%s608 + $0x18] sm:%s601]
            %617 = vst [vmem:[%s609 + $0x18] sm:%s601] %v616
            %v618 = vld [vmem:[%s608 + $0x20] sm:%s601]
            %619 = vst [vmem:[%s609 + $0x20] sm:%s601] %v618
            %v620 = vld [vmem:[%s608 + $0x28] sm:%s601]
            %621 = vst [vmem:[%s609 + $0x28] sm:%s601] %v620
          $region221: #{tpu_custom_call.1} parent=215 // loop_footer
            %s607 = sadd.s32 1, %s603
          $region222: #{tpu_custom_call.1} parent=215 // loop_footer_branch
            %602 = sbr.rel target = $region218
          $region223: #{tpu_custom_call.1} parent=215 // loop_exit
            _
        $region216: #{tpu_custom_call.1} parent=23 // pred_fallthru
          _
        // Predicated region
        $region235: #{tpu_custom_call.1} parent=23 // pred_check
          _
        $region236: #{tpu_custom_call.1} parent=23 // pred_check_branch
          %656 = sbr.rel (0) target = $region238
        $region237: #{tpu_custom_call.1} parent=23 // pred_region
          %657 = vsyncadd [#allocation2], 96
        $region238: #{tpu_custom_call.1} parent=23 // pred_fallthru
          _
        %s658 = sadd.s32 %s130, 7
        %s659 = sld [smem:[#allocation4 + %s658]]
        %s660 = sshrl.u32 %s659, 3
        %s661 = sand.u32 %s659, 7
        %s662 = smul.u32 %s660, 48
        %s663 = sadd.s32 %s661, %s662
        %s664 = sadd.s32 %s139, %s663
        %s665 = scalar_lea.vmem [#allocation5], %s664
        %s666 = scalar_lea.vmem %s128, 7 [#allocation8]
        %p668 = scmp.lt.u32.totalorder 1, 8
        %p669 = pneg %p668
        // Predicated region
        $region239: #{tpu_custom_call.1} parent=23 // pred_check
          _
        $region240: #{tpu_custom_call.1} parent=23 // pred_check_branch
          %671 = sbr.rel (%p668) target = $region242
        $region241: #{tpu_custom_call.1} parent=23 // pred_region
          %s697 = sand.u32 1, 7
          %p698 = scmp.eq.s32.totalorder %s697, 0
          %p699 = pneg %p698
          // Predicated region
          $region254: #{tpu_custom_call.1} parent=241 // pred_check
            _
          $region255: #{tpu_custom_call.1} parent=241 // pred_check_branch
            %701 = sbr.rel (%p698) target = $region257
          $region256: #{tpu_custom_call.1} parent=241 // pred_region
            %s702 = sand.u32 1, 7
            %s703 = ssub.s32 1, %s702
            %s704 = scalar_lea.vmem %s665, %s703 [#allocation5]
            %s705 = ssub.s32 1, %s702
            %s706 = scalar_lea.vmem %s666, %s705 [#allocation8]
            %s707 = sshll.u32 1, %s702
            %s708 = ssub.s32 %s707, 1
            loop: start=0, step=1, limit=1
            $region258: #{tpu_custom_call.1} parent=256 // loop_pre_header
              _
            $region259: #{tpu_custom_call.1} parent=256 // loop_header
              %s710 = sphi 0, %s714
              %p711 = scmp.ge.s32.totalorder %s710, 1
              %s715 = sphi %s704, %s704
              %s716 = sphi %s706, %s706
            $region260: #{tpu_custom_call.1} parent=256 // loop_header_branch
              %713 = sbr.rel (%p711) target = $region264
            $region261: #{tpu_custom_call.1} parent=256 // loop_body
              %v717 = vld [vmem:[%s715] sm:%s708]
              %718 = vst [vmem:[%s716] sm:%s708] %v717
              %v719 = vld [vmem:[%s715 + $0x8] sm:%s708]
              %720 = vst [vmem:[%s716 + $0x8] sm:%s708] %v719
              %v721 = vld [vmem:[%s715 + $0x10] sm:%s708]
              %722 = vst [vmem:[%s716 + $0x10] sm:%s708] %v721
              %v723 = vld [vmem:[%s715 + $0x18] sm:%s708]
              %724 = vst [vmem:[%s716 + $0x18] sm:%s708] %v723
              %v725 = vld [vmem:[%s715 + $0x20] sm:%s708]
              %726 = vst [vmem:[%s716 + $0x20] sm:%s708] %v725
              %v727 = vld [vmem:[%s715 + $0x28] sm:%s708]
              %728 = vst [vmem:[%s716 + $0x28] sm:%s708] %v727
            $region262: #{tpu_custom_call.1} parent=256 // loop_footer
              %s714 = sadd.s32 1, %s710
            $region263: #{tpu_custom_call.1} parent=256 // loop_footer_branch
              %709 = sbr.rel target = $region259
            $region264: #{tpu_custom_call.1} parent=256 // loop_exit
              _
          $region257: #{tpu_custom_call.1} parent=241 // pred_fallthru
            _
        $region242: #{tpu_custom_call.1} parent=23 // pred_fallthru
          _
        // Predicated region
        $region243: #{tpu_custom_call.1} parent=23 // pred_check
          %p672 = pneg %p668
        $region244: #{tpu_custom_call.1} parent=23 // pred_check_branch
          %674 = sbr.rel (%p672) target = $region246
        $region245: #{tpu_custom_call.1} parent=23 // pred_region
          %s675 = sshll.u32 1, 1
          %s676 = ssub.s32 %s675, 1
          loop: start=0, step=1, limit=1
          $region247: #{tpu_custom_call.1} parent=245 // loop_pre_header
            _
          $region248: #{tpu_custom_call.1} parent=245 // loop_header
            %s678 = sphi 0, %s682
            %p679 = scmp.ge.s32.totalorder %s678, 1
            %s683 = sphi %s665, %s665
            %s684 = sphi %s666, %s666
          $region249: #{tpu_custom_call.1} parent=245 // loop_header_branch
            %681 = sbr.rel (%p679) target = $region253
          $region250: #{tpu_custom_call.1} parent=245 // loop_body
            %v685 = vld [vmem:[%s683] sm:%s676]
            %686 = vst [vmem:[%s684] sm:%s676] %v685
            %v687 = vld [vmem:[%s683 + $0x8] sm:%s676]
            %688 = vst [vmem:[%s684 + $0x8] sm:%s676] %v687
            %v689 = vld [vmem:[%s683 + $0x10] sm:%s676]
            %690 = vst [vmem:[%s684 + $0x10] sm:%s676] %v689
            %v691 = vld [vmem:[%s683 + $0x18] sm:%s676]
            %692 = vst [vmem:[%s684 + $0x18] sm:%s676] %v691
            %v693 = vld [vmem:[%s683 + $0x20] sm:%s676]
            %694 = vst [vmem:[%s684 + $0x20] sm:%s676] %v693
            %v695 = vld [vmem:[%s683 + $0x28] sm:%s676]
            %696 = vst [vmem:[%s684 + $0x28] sm:%s676] %v695
          $region251: #{tpu_custom_call.1} parent=245 // loop_footer
            %s682 = sadd.s32 1, %s678
          $region252: #{tpu_custom_call.1} parent=245 // loop_footer_branch
            %677 = sbr.rel target = $region248
          $region253: #{tpu_custom_call.1} parent=245 // loop_exit
            _
        $region246: #{tpu_custom_call.1} parent=23 // pred_fallthru
          _
        // Predicated region
        $region265: #{tpu_custom_call.1} parent=23 // pred_check
          _
        $region266: #{tpu_custom_call.1} parent=23 // pred_check_branch
          %731 = sbr.rel (0) target = $region268
        $region267: #{tpu_custom_call.1} parent=23 // pred_region
          %732 = vsyncadd [#allocation2], 96
        $region268: #{tpu_custom_call.1} parent=23 // pred_fallthru
          _
        %s733 = smul.u32 1, 6
        %s734 = sshll.u32 %s733, 4
        %735 = dma.done [#allocation2], %s734
        %s736 = sshll.u32 %s733, 4
        %737 = dma.done [#allocation2], %s736
        %s738 = sshll.u32 %s733, 4
        %739 = dma.done [#allocation2], %s738
        %s740 = sshll.u32 %s733, 4
        %741 = dma.done [#allocation2], %s740
        %s742 = sshll.u32 %s733, 4
        %743 = dma.done [#allocation2], %s742
        %s744 = sshll.u32 %s733, 4
        %745 = dma.done [#allocation2], %s744
        %s746 = sshll.u32 %s733, 4
        %747 = dma.done [#allocation2], %s746
        %s748 = sshll.u32 %s733, 4
        %749 = dma.done [#allocation2], %s748
        %s750 = sand.u32 %s64, 1
        %s751 = scalar_lea.sflag [#allocation7], %s750
        %s752 = sand.u32 %s64, 1
        %s753 = smul.addr %s752, 48
        %s754 = scalar_lea.vmem [#allocation8], %s753
        // Predicated region
        $region269: #{tpu_custom_call.1} parent=23 // pred_check
          %p755 = pneg %p74
        $region270: #{tpu_custom_call.1} parent=23 // pred_check_branch
          %757 = sbr.rel (%p755) target = $region272
        $region271: #{tpu_custom_call.1} parent=23 // pred_region
          %s758 = smul.u32 6, %s26
          %s760 = ssub.s32 768, 768
          %761 = vsyncadd %s751, %s760
          %s762 = smul.addr %s25, 6
          %s763 = sadd.s32 %s758, %s762
          %s764 = smul.addr %s763, 128
          %s765 = scalar_lea.hbm %s2, %s764
          %s767 = sshll.u32 %s754, 4
          %s768 = int_to_ptr.vmem [resolvable:$true] %s767
          %770 = dma.vmem_to_hbm [thread:$0]  %s768, 768, %s765, %s751
        $region272: #{tpu_custom_call.1} parent=23 // pred_fallthru
          _
      $region24: #{tpu_custom_call.1} parent=5 // pred_fallthru
        _
      %p771 = scmp.le.s32.totalorder 2, %s16
      // Predicated region
      $region273: #{tpu_custom_call.1} parent=5 // pred_check
        %p772 = pneg %p771
      $region274: #{tpu_custom_call.1} parent=5 // pred_check_branch
        %774 = sbr.rel (%p772) target = $region276
      $region275: #{tpu_custom_call.1} parent=5 // pred_region
        %s775 = ssub.s32 %s16, 2
        // Predicated region
        $region277: #{tpu_custom_call.1} parent=275 // pred_check
          %p776 = pneg %p80
        $region278: #{tpu_custom_call.1} parent=275 // pred_check_branch
          %778 = sbr.rel (%p776) target = $region280
        $region279: #{tpu_custom_call.1} parent=275 // pred_region
          %s779 = sand.u32 %s65, 1
          %s780 = scalar_lea.sflag [#allocation7], %s779
          %s781 = sand.u32 %s65, 1
          %s782 = smul.addr %s781, 48
          %s783 = scalar_lea.vmem [#allocation8], %s782
          %784 = dma.done %s780, 768
        $region280: #{tpu_custom_call.1} parent=275 // pred_fallthru
          _
      $region276: #{tpu_custom_call.1} parent=5 // pred_fallthru
        _
    $region6: #{tpu_custom_call.1} parent=1 // loop_footer
      %s20 = sadd.s32 1, %s16
    $region7: #{tpu_custom_call.1} parent=1 // loop_footer_branch
      %15 = sbr.rel target = $region3
    $region8: #{tpu_custom_call.1} parent=1 // loop_exit
      _
    %785 = vsyncpa [#allocation6], 1
    %s786 = scalar_lea.sflag [#allocation6], 1
    %787 = vsyncpa %s786, 1
    %788 = vsyncpa [#allocation7], 1
    %s789 = scalar_lea.sflag [#allocation7], 1
    %790 = vsyncpa %s789, 1
  %791 = vsyncmov [#allocation2]
  %s792 = vpop.sfrf %791
  %p793 = scmp.eq.s32.totalorder %s792, 0
  %p794 = pneg %p793
  %796 = shalt.err (%p794)

</llo_original>
